<compile_context>
chip_gen: v7x
topology: tpu7x:2x2x1
jax: 0.10.0
libtpu: 0.0.40
codegen_flags: <defaults>
</compile_context>

<pallas_src>
import functools

import jax
import jax.numpy as jnp
from jax.experimental import pallas as pl
from jax.experimental.pallas import tpu as pltpu


def _round_up(x, m):
    return ((x + m - 1) // m) * m


def _cdiv(a, b):
    return -(-a // b)


def _vmem_capacity_bytes():
    """Physical VMEM of the local TPU generation (conservative fallback)."""
    try:
        info = pltpu.get_tpu_info()
        cap = int(getattr(info, "vmem_capacity_bytes", 0) or 0)
        if cap > 0:
            return cap
    except Exception:
        pass
    return 64 * 1024 * 1024   # v7x-sized fallback: safe everywhere


# ---------------------------------------------------------------------------
# Kernels
# ---------------------------------------------------------------------------
def _conv_kernel(p0_ref, p1_ref, p2_ref, w_ref, b_ref, o_ref, acc_ref, *, wo_p):
    """Stride-2 3x3 conv on one tile of output rows.

    p*_ref:  (tr, Wp_in, Cp)   kh row-planes (padded input rows kh, kh+2, ...)
    w_ref:   (9, Cp, Cop)      per-tap weight matrices (resident across grid)
    b_ref:   (1, Cop)          bias (f32)
    o_ref:   (tr*wo_p, Cop)    lane-dense output tile
    acc_ref: (tr*wo_p, Cop)    f32 scratch accumulator (in-place +=)
    """
    tr = p0_ref.shape[0]
    cp = p0_ref.shape[2]
    first = True
    for kh, p_ref in enumerate((p0_ref, p1_ref, p2_ref)):
        for kw in range(3):
            # kw tap: strided sublane load, no HBM-side gather.
            tap = p_ref[:, pl.ds(kw, wo_p, stride=2), :]       # (tr, wo_p, Cp)
            tap = tap.reshape(tr * wo_p, cp)                   # wo_p % 8 == 0 -> trivial
            contrib = jnp.dot(tap, w_ref[kh * 3 + kw],
                              preferred_element_type=jnp.float32)
            if first:
                acc_ref[...] = contrib
                first = False
            else:
                acc_ref[...] += contrib
    o_ref[...] = (acc_ref[...] + b_ref[...]).astype(o_ref.dtype)


def _avgpool_kernel(x_ref, o_ref, *, wo):
    """2x2 / stride-2 average pool on one tile of output rows.

    x_ref: (tr, 2, 2*wo, C)  row-pairs of the (cropped) NHWC input
    o_ref: (tr, wo, C)
    """
    ev = x_ref[:, :, pl.ds(0, wo, stride=2), :].astype(jnp.float32)
    od = x_ref[:, :, pl.ds(1, wo, stride=2), :].astype(jnp.float32)
    s = ev + od
    o_ref[...] = ((s[:, 0] + s[:, 1]) * 0.25).astype(o_ref.dtype)
    # TODO(synk): for C < 128 the store minor dim is masked (vst.msk); real
    # UNet channel counts (>=128) are lane-dense already.


# ---------------------------------------------------------------------------
# Tile-size / VMEM budgeting (generation-aware: 128 MiB v5e/v6e, 64 MiB v7x)
# ---------------------------------------------------------------------------
def _choose_conv_tile_rows(NR, Wp_in, Cp, Wo_p, Cop, itemsize):
    cap = _vmem_capacity_bytes()
    budget = int(0.70 * cap)
    fixed = 2 * 9 * Cp * Cop * itemsize + 2 * Cop * 4          # dbl-buf weights + bias
    per_row = (2 * 3 * Wp_in * Cp * itemsize                   # 3 planes, double-buffered
               + 2 * Wo_p * Cop * itemsize                     # output, double-buffered
               + Wo_p * Cop * 4)                               # f32 accumulator scratch
    tr = (budget - fixed) // max(per_row, 1)
    tr = int(max(8, min(4096, (tr // 8) * 8)))
    if NR > 8:  # guarantee >=2 grid steps so both v7x TensorCores get work
        tr = min(tr, _round_up(_cdiv(NR, 2), 8))
    return min(tr, _round_up(NR, 8))


def _choose_pool_tile_rows(NR, Wo, C, itemsize):
    cap = _vmem_capacity_bytes()
    budget = int(0.60 * cap)
    per_row = 2 * (2 * 2 * Wo * C + Wo * C) * itemsize         # dbl-buffered in + out
    tr = budget // max(per_row, 1)
    tr = int(max(8, min(4096, (tr // 8) * 8)))
    if NR > 8:
        tr = min(tr, _round_up(_cdiv(NR, 2), 8))
    return min(tr, _round_up(NR, 8))


# ---------------------------------------------------------------------------
# Conv path (use_conv=True) — NHWC native
# ---------------------------------------------------------------------------
@functools.partial(jax.jit, static_argnums=(3,))
def _conv2d_nhwc_impl(x, weight_oihw, bias, tr):
    N, H, W, C = x.shape
    Cout, Cin, KH, KW = weight_oihw.shape
    Ho = (H + 2 - KH) // 2 + 1
    Wo = (W + 2 - KW) // 2 + 1

    dtype = x.dtype
    itemsize = jnp.dtype(dtype).itemsize
    Cp = _round_up(Cin, 128)          # MXU K / lane-aligned channels
    Cop = _round_up(Cout, 128)        # lane-dense output
    Wo_p = _round_up(Wo, 8)           # sublane-aligned output width
    Wp_in = 2 * Wo_p + 2              # padded input width covering all taps
    NR = N * Ho
    NRp = _round_up(NR, tr)

    # Spatial pad (top/bottom 1, left 1, right up to Wp_in) + channel pad.
    xp = jnp.pad(x, ((0, 0), (1, 1), (1, Wp_in - W - 1), (0, Cp - Cin)))

    # Three kh row-planes — the only gathered HBM intermediates (~1.5x input
    # bytes, vs ~2.25x for a full 9-tap im2col).
    planes = []
    for kh in range(KH):
        p = xp[:, kh:kh + 2 * Ho:2, :, :].reshape(NR, Wp_in, Cp)
        if NRp != NR:
            p = jnp.pad(p, ((0, NRp - NR), (0, 0), (0, 0)))
        planes.append(p)

    # (Cout, Cin, KH, KW) -> (KH*KW, Cin, Cout), padded to (9, Cp, Cop).
    w = jnp.transpose(weight_oihw, (2, 3, 1, 0)).reshape(KH * KW, Cin, Cout)
    w = jnp.pad(w, ((0, 0), (0, Cp - Cin), (0, Cop - Cout))).astype(dtype)
    b = jnp.pad(bias.astype(jnp.float32), (0, Cop - Cout)).reshape(1, Cop)

    in_specs = [pl.BlockSpec((tr, Wp_in, Cp), lambda i: (i, 0, 0))
                for _ in range(KH)]
    in_specs.append(pl.BlockSpec((KH * KW, Cp, Cop), lambda i: (0, 0, 0)))
    in_specs.append(pl.BlockSpec((1, Cop), lambda i: (0, 0)))

    usage = (2 * 3 * tr * Wp_in * Cp * itemsize
             + 2 * tr * Wo_p * Cop * itemsize
             + 2 * KH * KW * Cp * Cop * itemsize
             + tr * Wo_p * Cop * 4
             + 2 * Cop * 4)
    cap = _vmem_capacity_bytes()
    vmem_limit = int(min(int(0.92 * cap),
                         max(32 * 1024 * 1024, int(1.25 * usage))))

    cost = pl.CostEstimate(
        flops=2 * NRp * Wo_p * KH * KW * Cp * Cop,
        transcendentals=0,
        bytes_accessed=int((3 * NRp * Wp_in * Cp + KH * KW * Cp * Cop
                            + NRp * Wo_p * Cop) * itemsize + Cop * 4),
    )

    out = pl.pallas_call(
        functools.partial(_conv_kernel, wo_p=Wo_p),
        out_shape=jax.ShapeDtypeStruct((NRp * Wo_p, Cop), dtype),
        grid=(NRp // tr,),
        in_specs=in_specs,
        out_specs=pl.BlockSpec((tr * Wo_p, Cop), lambda i: (i, 0)),
        scratch_shapes=[pltpu.VMEM((tr * Wo_p, Cop), jnp.float32)],
        compiler_params=pltpu.CompilerParams(
            dimension_semantics=("parallel",),
            vmem_limit_bytes=vmem_limit,
        ),
        cost_estimate=cost,
    )(*planes, w, b)

    out = out.reshape(NRp, Wo_p, Cop)[:NR, :Wo, :Cout]
    return out.reshape(N, Ho, Wo, Cout)


def downsample_conv2d_nhwc(x_nhwc, weight_oihw, bias, *, tile_rows=None):
    """Conv2d(channels, channels, 3, stride=2, padding=1), NHWC in/out."""
    N, H, W, C = x_nhwc.shape
    Cout, Cin, KH, KW = weight_oihw.shape
    assert C == Cin and KH == 3 and KW == 3
    Ho = (H + 2 - KH) // 2 + 1
    Wo = (W + 2 - KW) // 2 + 1
    itemsize = jnp.dtype(x_nhwc.dtype).itemsize
    Cp = _round_up(Cin, 128)
    Cop = _round_up(Cout, 128)
    Wo_p = _round_up(Wo, 8)
    Wp_in = 2 * Wo_p + 2
    NR = N * Ho
    if tile_rows is None:
        tr = _choose_conv_tile_rows(NR, Wp_in, Cp, Wo_p, Cop, itemsize)
    else:
        tr = min(_round_up(max(int(tile_rows), 8), 8), _round_up(NR, 8))
    return _conv2d_nhwc_impl(x_nhwc, weight_oihw, bias, tr)


def downsample_conv2d(x_nchw, weight_oihw, bias, *, tile_rows=None):
    """PyTorch-parity wrapper (NCHW in/out). Prefer the NHWC entry point."""
    x = jnp.transpose(x_nchw, (0, 2, 3, 1))
    y = downsample_conv2d_nhwc(x, weight_oihw, bias, tile_rows=tile_rows)
    return jnp.transpose(y, (0, 3, 1, 2))


# ---------------------------------------------------------------------------
# AvgPool path (use_conv=False) — NHWC native
# ---------------------------------------------------------------------------
@functools.partial(jax.jit, static_argnums=(1,))
def _avgpool2d_nhwc_impl(x, tr):
    N, H, W, C = x.shape
    Ho, Wo = H // 2, W // 2
    dtype = x.dtype
    itemsize = jnp.dtype(dtype).itemsize

    # Crop odd trailing row/col (PyTorch AvgPool2d(2) floor semantics); the
    # row-pair view is then a pure reshape of contiguous NHWC data.
    xr = x[:, :2 * Ho, :2 * Wo, :].reshape(N * Ho, 2, 2 * Wo, C)
    NR = N * Ho
    NRp = _round_up(NR, tr)
    if NRp != NR:
        xr = jnp.pad(xr, ((0, NRp - NR), (0, 0), (0, 0), (0, 0)))

    usage = 2 * tr * (2 * 2 * Wo * C + Wo * C) * itemsize
    cap = _vmem_capacity_bytes()
    vmem_limit = int(min(int(0.92 * cap),
                         max(32 * 1024 * 1024, int(1.5 * usage))))

    out = pl.pallas_call(
        functools.partial(_avgpool_kernel, wo=Wo),
        out_shape=jax.ShapeDtypeStruct((NRp, Wo, C), dtype),
        grid=(NRp // tr,),
        in_specs=[pl.BlockSpec((tr, 2, 2 * Wo, C), lambda i: (i, 0, 0, 0))],
        out_specs=pl.BlockSpec((tr, Wo, C), lambda i: (i, 0, 0)),
        compiler_params=pltpu.CompilerParams(
            dimension_semantics=("parallel",),
            vmem_limit_bytes=vmem_limit,
        ),
    )(xr)

    return out[:NR].reshape(N, Ho, Wo, C)


def downsample_avgpool2d_nhwc(x_nhwc, *, tile_rows=None):
    """AvgPool2d(kernel_size=2, stride=2), NHWC in/out."""
    N, H, W, C = x_nhwc.shape
    Ho, Wo = H // 2, W // 2
    NR = N * Ho
    itemsize = jnp.dtype(x_nhwc.dtype).itemsize
    if tile_rows is None:
        tr = _choose_pool_tile_rows(NR, Wo, C, itemsize)
    else:
        tr = min(_round_up(max(int(tile_rows), 8), 8), _round_up(NR, 8))
    return _avgpool2d_nhwc_impl(x_nhwc, tr)


def downsample_avgpool2d(x_nchw, *, tile_rows=None):
    """PyTorch-parity wrapper (NCHW in/out). Prefer the NHWC entry point."""
    x = jnp.transpose(x_nchw, (0, 2, 3, 1))
    y = downsample_avgpool2d_nhwc(x, tile_rows=tile_rows)
    return jnp.transpose(y, (0, 3, 1, 2))


# ---------------------------------------------------------------------------
# Main (self-test)
# ---------------------------------------------------------------------------
if __name__ == "__main__":
    key = jax.random.PRNGKey(0)
    kx, kwt, kb = jax.random.split(key, 3)

    N, C, H, W = 2, 4, 16, 16
    x = jax.random.normal(kx, (N, C, H, W), dtype=jnp.float32)

    # Deterministic Conv2d(channels, channels, 3) parameters (PyTorch OIHW).
    weight = 0.1 * jax.random.normal(kwt, (C, C, 3, 3), dtype=jnp.float32)
    bias = 0.1 * jax.random.normal(kb, (C,), dtype=jnp.float32)

    # ---- use_conv=True path, f32, NCHW parity ------------------------------
    y_conv = jax.block_until_ready(downsample_conv2d(x, weight, bias))
    ref = jax.lax.conv_general_dilated(
        x, weight, window_strides=(2, 2), padding=((1, 1), (1, 1)),
        dimension_numbers=("NCHW", "OIHW", "NCHW")) + bias[None, :, None, None]
    assert y_conv.shape == (N, C, H // 2, W // 2)
    assert jnp.allclose(y_conv, ref, atol=1e-4, rtol=1e-4)

    # Forced small tile (exercises the multi-step pipelined grid explicitly).
    y_conv_tiled = jax.block_until_ready(
        downsample_conv2d(x, weight, bias, tile_rows=8))
    assert jnp.allclose(y_conv_tiled, ref, atol=1e-4, rtol=1e-4)

    # ---- use_conv=True path, bf16, NHWC (the intended fast path) -----------
    x_nhwc_bf16 = jnp.transpose(x, (0, 2, 3, 1)).astype(jnp.bfloat16)
    w_bf16 = weight.astype(jnp.bfloat16)
    y_bf16 = jax.block_until_ready(
        downsample_conv2d_nhwc(x_nhwc_bf16, w_bf16, bias))
    ref_bf16 = jax.lax.conv_general_dilated(
        jnp.transpose(x_nhwc_bf16.astype(jnp.float32), (0, 3, 1, 2)),
        w_bf16.astype(jnp.float32),
        window_strides=(2, 2), padding=((1, 1), (1, 1)),
        dimension_numbers=("NCHW", "OIHW", "NCHW")) + bias[None, :, None, None]
    ref_bf16 = jnp.transpose(ref_bf16, (0, 2, 3, 1))
    assert y_bf16.shape == (N, H // 2, W // 2, C)
    assert jnp.allclose(y_bf16.astype(jnp.float32), ref_bf16,
                        atol=2e-2, rtol=2e-2)

    # ---- use_conv=False path ------------------------------------------------
    y_pool = jax.block_until_ready(downsample_avgpool2d(x))
    ref_pool = jnp.mean(x.reshape(N, C, H // 2, 2, W // 2, 2), axis=(3, 5))
    assert y_pool.shape == (N, C, H // 2, W // 2)
    assert jnp.allclose(y_pool, ref_pool, atol=1e-5, rtol=1e-5)

    x_nhwc = jnp.transpose(x, (0, 2, 3, 1))
    y_pool_nhwc = jax.block_until_ready(
        downsample_avgpool2d_nhwc(x_nhwc, tile_rows=8))
    assert jnp.allclose(jnp.transpose(y_pool_nhwc, (0, 3, 1, 2)), ref_pool,
                        atol=1e-5, rtol=1e-5)

    print("KERNEL_OK")
</pallas_src>

<mosaic_0001>
module attributes {stable_mosaic.version = 11 : i64} {
  func.func @_conv_kernel(%arg0: i32, %arg1: memref<8x18x128xf32, #tpu.memory_space<vmem>>, %arg2: memref<8x18x128xf32, #tpu.memory_space<vmem>>, %arg3: memref<8x18x128xf32, #tpu.memory_space<vmem>>, %arg4: memref<9x128x128xf32, #tpu.memory_space<vmem>>, %arg5: memref<1x128xf32, #tpu.memory_space<vmem>>, %arg6: memref<64x128xf32, #tpu.memory_space<vmem>>, %arg7: memref<64x128xf32, #tpu.memory_space<vmem>>) attributes {dimension_semantics = [#tpu.dimension_semantics<parallel>], iteration_bounds = array<i64: 2>, scalar_prefetch = 0 : i64, scratch_operands = 1 : i64, tpu.core_type = #tpu.core_type<tc>, window_params = [{transform_indices = @transform_0, window_bounds = array<i64: 8, 18, 128>}, {transform_indices = @transform_1, window_bounds = array<i64: 8, 18, 128>}, {transform_indices = @transform_2, window_bounds = array<i64: 8, 18, 128>}, {pipeline_mode = #tpu.pipeline_mode<synchronous>, transform_indices = @transform_3, window_bounds = array<i64: 9, 128, 128>}, {pipeline_mode = #tpu.pipeline_mode<synchronous>, transform_indices = @transform_4, window_bounds = array<i64: 1, 128>}, {transform_indices = @transform_5, window_bounds = array<i64: 64, 128>}]} {
    %c0 = arith.constant 0 : index
    %c0_0 = arith.constant 0 : index
    %c0_1 = arith.constant 0 : index
    %0 = tpu.strided_load %arg1[%c0, %c0_0, %c0_1] {strides = array<i32: 1, 2, 1>} : memref<8x18x128xf32, #tpu.memory_space<vmem>>, vector<8x8x128xf32>
    %1 = vector.shape_cast %0 : vector<8x8x128xf32> to vector<64x128xf32>
    %c0_2 = arith.constant 0 : index
    %c0_3 = arith.constant 0 : index
    %c0_4 = arith.constant 0 : index
    %2 = vector.load %arg4[%c0_2, %c0_3, %c0_4] : memref<9x128x128xf32, #tpu.memory_space<vmem>>, vector<1x128x128xf32>
    %3 = vector.shape_cast %2 : vector<1x128x128xf32> to vector<128x128xf32>
    %cst = arith.constant dense<0.000000e+00> : vector<64x128xf32>
    %4 = tpu.matmul %1, %3, %cst {dimension_numbers = #tpu.dot_dimension_numbers<[1], [0], [0], [1], [0, 0, 1, 1], [], []>} : vector<64x128xf32>, vector<128x128xf32>, vector<64x128xf32> -> vector<64x128xf32>
    %c0_5 = arith.constant 0 : index
    %c0_6 = arith.constant 0 : index
    %5 = vector.load %arg7[%c0_5, %c0_6] : memref<64x128xf32, #tpu.memory_space<vmem>>, vector<64x128xf32>
    tpu.vector_store %arg7[%c0_5, %c0_6], %4 {strides = array<i32>} : memref<64x128xf32, #tpu.memory_space<vmem>>, vector<64x128xf32>,
    %c0_7 = arith.constant 0 : index
    %c1 = arith.constant 1 : index
    %c0_8 = arith.constant 0 : index
    %6 = tpu.strided_load %arg1[%c0_7, %c1, %c0_8] {strides = array<i32: 1, 2, 1>} : memref<8x18x128xf32, #tpu.memory_space<vmem>>, vector<8x8x128xf32>
    %7 = vector.shape_cast %6 : vector<8x8x128xf32> to vector<64x128xf32>
    %c1_9 = arith.constant 1 : index
    %c0_10 = arith.constant 0 : index
    %c0_11 = arith.constant 0 : index
    %8 = vector.load %arg4[%c1_9, %c0_10, %c0_11] : memref<9x128x128xf32, #tpu.memory_space<vmem>>, vector<1x128x128xf32>
    %9 = vector.shape_cast %8 : vector<1x128x128xf32> to vector<128x128xf32>
    %cst_12 = arith.constant dense<0.000000e+00> : vector<64x128xf32>
    %10 = tpu.matmul %7, %9, %cst_12 {dimension_numbers = #tpu.dot_dimension_numbers<[1], [0], [0], [1], [0, 0, 1, 1], [], []>} : vector<64x128xf32>, vector<128x128xf32>, vector<64x128xf32> -> vector<64x128xf32>
    %c0_13 = arith.constant 0 : index
    %c0_14 = arith.constant 0 : index
    %11 = vector.load %arg7[%c0_13, %c0_14] : memref<64x128xf32, #tpu.memory_space<vmem>>, vector<64x128xf32>
    %12 = arith.addf %11, %10 : vector<64x128xf32>
    %c0_15 = arith.constant 0 : index
    %c0_16 = arith.constant 0 : index
    %13 = vector.load %arg7[%c0_15, %c0_16] : memref<64x128xf32, #tpu.memory_space<vmem>>, vector<64x128xf32>
    tpu.vector_store %arg7[%c0_15, %c0_16], %12 {strides = array<i32>} : memref<64x128xf32, #tpu.memory_space<vmem>>, vector<64x128xf32>,
    %c0_17 = arith.constant 0 : index
    %c2 = arith.constant 2 : index
    %c0_18 = arith.constant 0 : index
    %14 = tpu.strided_load %arg1[%c0_17, %c2, %c0_18] {strides = array<i32: 1, 2, 1>} : memref<8x18x128xf32, #tpu.memory_space<vmem>>, vector<8x8x128xf32>
    %15 = vector.shape_cast %14 : vector<8x8x128xf32> to vector<64x128xf32>
    %c2_19 = arith.constant 2 : index
    %c0_20 = arith.constant 0 : index
    %c0_21 = arith.constant 0 : index
    %16 = vector.load %arg4[%c2_19, %c0_20, %c0_21] : memref<9x128x128xf32, #tpu.memory_space<vmem>>, vector<1x128x128xf32>
    %17 = vector.shape_cast %16 : vector<1x128x128xf32> to vector<128x128xf32>
    %cst_22 = arith.constant dense<0.000000e+00> : vector<64x128xf32>
    %18 = tpu.matmul %15, %17, %cst_22 {dimension_numbers = #tpu.dot_dimension_numbers<[1], [0], [0], [1], [0, 0, 1, 1], [], []>} : vector<64x128xf32>, vector<128x128xf32>, vector<64x128xf32> -> vector<64x128xf32>
    %c0_23 = arith.constant 0 : index
    %c0_24 = arith.constant 0 : index
    %19 = vector.load %arg7[%c0_23, %c0_24] : memref<64x128xf32, #tpu.memory_space<vmem>>, vector<64x128xf32>
    %20 = arith.addf %19, %18 : vector<64x128xf32>
    %c0_25 = arith.constant 0 : index
    %c0_26 = arith.constant 0 : index
    %21 = vector.load %arg7[%c0_25, %c0_26] : memref<64x128xf32, #tpu.memory_space<vmem>>, vector<64x128xf32>
    tpu.vector_store %arg7[%c0_25, %c0_26], %20 {strides = array<i32>} : memref<64x128xf32, #tpu.memory_space<vmem>>, vector<64x128xf32>,
    %c0_27 = arith.constant 0 : index
    %c0_28 = arith.constant 0 : index
    %c0_29 = arith.constant 0 : index
    %22 = tpu.strided_load %arg2[%c0_27, %c0_28, %c0_29] {strides = array<i32: 1, 2, 1>} : memref<8x18x128xf32, #tpu.memory_space<vmem>>, vector<8x8x128xf32>
    %23 = vector.shape_cast %22 : vector<8x8x128xf32> to vector<64x128xf32>
    %c3 = arith.constant 3 : index
    %c0_30 = arith.constant 0 : index
    %c0_31 = arith.constant 0 : index
    %24 = vector.load %arg4[%c3, %c0_30, %c0_31] : memref<9x128x128xf32, #tpu.memory_space<vmem>>, vector<1x128x128xf32>
    %25 = vector.shape_cast %24 : vector<1x128x128xf32> to vector<128x128xf32>
    %cst_32 = arith.constant dense<0.000000e+00> : vector<64x128xf32>
    %26 = tpu.matmul %23, %25, %cst_32 {dimension_numbers = #tpu.dot_dimension_numbers<[1], [0], [0], [1], [0, 0, 1, 1], [], []>} : vector<64x128xf32>, vector<128x128xf32>, vector<64x128xf32> -> vector<64x128xf32>
    %c0_33 = arith.constant 0 : index
    %c0_34 = arith.constant 0 : index
    %27 = vector.load %arg7[%c0_33, %c0_34] : memref<64x128xf32, #tpu.memory_space<vmem>>, vector<64x128xf32>
    %28 = arith.addf %27, %26 : vector<64x128xf32>
    %c0_35 = arith.constant 0 : index
    %c0_36 = arith.constant 0 : index
    %29 = vector.load %arg7[%c0_35, %c0_36] : memref<64x128xf32, #tpu.memory_space<vmem>>, vector<64x128xf32>
    tpu.vector_store %arg7[%c0_35, %c0_36], %28 {strides = array<i32>} : memref<64x128xf32, #tpu.memory_space<vmem>>, vector<64x128xf32>,
    %c0_37 = arith.constant 0 : index
    %c1_38 = arith.constant 1 : index
    %c0_39 = arith.constant 0 : index
    %30 = tpu.strided_load %arg2[%c0_37, %c1_38, %c0_39] {strides = array<i32: 1, 2, 1>} : memref<8x18x128xf32, #tpu.memory_space<vmem>>, vector<8x8x128xf32>
    %31 = vector.shape_cast %30 : vector<8x8x128xf32> to vector<64x128xf32>
    %c4 = arith.constant 4 : index
    %c0_40 = arith.constant 0 : index
    %c0_41 = arith.constant 0 : index
    %32 = vector.load %arg4[%c4, %c0_40, %c0_41] : memref<9x128x128xf32, #tpu.memory_space<vmem>>, vector<1x128x128xf32>
    %33 = vector.shape_cast %32 : vector<1x128x128xf32> to vector<128x128xf32>
    %cst_42 = arith.constant dense<0.000000e+00> : vector<64x128xf32>
    %34 = tpu.matmul %31, %33, %cst_42 {dimension_numbers = #tpu.dot_dimension_numbers<[1], [0], [0], [1], [0, 0, 1, 1], [], []>} : vector<64x128xf32>, vector<128x128xf32>, vector<64x128xf32> -> vector<64x128xf32>
    %c0_43 = arith.constant 0 : index
    %c0_44 = arith.constant 0 : index
    %35 = vector.load %arg7[%c0_43, %c0_44] : memref<64x128xf32, #tpu.memory_space<vmem>>, vector<64x128xf32>
    %36 = arith.addf %35, %34 : vector<64x128xf32>
    %c0_45 = arith.constant 0 : index
    %c0_46 = arith.constant 0 : index
    %37 = vector.load %arg7[%c0_45, %c0_46] : memref<64x128xf32, #tpu.memory_space<vmem>>, vector<64x128xf32>
    tpu.vector_store %arg7[%c0_45, %c0_46], %36 {strides = array<i32>} : memref<64x128xf32, #tpu.memory_space<vmem>>, vector<64x128xf32>,
    %c0_47 = arith.constant 0 : index
    %c2_48 = arith.constant 2 : index
    %c0_49 = arith.constant 0 : index
    %38 = tpu.strided_load %arg2[%c0_47, %c2_48, %c0_49] {strides = array<i32: 1, 2, 1>} : memref<8x18x128xf32, #tpu.memory_space<vmem>>, vector<8x8x128xf32>
    %39 = vector.shape_cast %38 : vector<8x8x128xf32> to vector<64x128xf32>
    %c5 = arith.constant 5 : index
    %c0_50 = arith.constant 0 : index
    %c0_51 = arith.constant 0 : index
    %40 = vector.load %arg4[%c5, %c0_50, %c0_51] : memref<9x128x128xf32, #tpu.memory_space<vmem>>, vector<1x128x128xf32>
    %41 = vector.shape_cast %40 : vector<1x128x128xf32> to vector<128x128xf32>
    %cst_52 = arith.constant dense<0.000000e+00> : vector<64x128xf32>
    %42 = tpu.matmul %39, %41, %cst_52 {dimension_numbers = #tpu.dot_dimension_numbers<[1], [0], [0], [1], [0, 0, 1, 1], [], []>} : vector<64x128xf32>, vector<128x128xf32>, vector<64x128xf32> -> vector<64x128xf32>
    %c0_53 = arith.constant 0 : index
    %c0_54 = arith.constant 0 : index
    %43 = vector.load %arg7[%c0_53, %c0_54] : memref<64x128xf32, #tpu.memory_space<vmem>>, vector<64x128xf32>
    %44 = arith.addf %43, %42 : vector<64x128xf32>
    %c0_55 = arith.constant 0 : index
    %c0_56 = arith.constant 0 : index
    %45 = vector.load %arg7[%c0_55, %c0_56] : memref<64x128xf32, #tpu.memory_space<vmem>>, vector<64x128xf32>
    tpu.vector_store %arg7[%c0_55, %c0_56], %44 {strides = array<i32>} : memref<64x128xf32, #tpu.memory_space<vmem>>, vector<64x128xf32>,
    %c0_57 = arith.constant 0 : index
    %c0_58 = arith.constant 0 : index
    %c0_59 = arith.constant 0 : index
    %46 = tpu.strided_load %arg3[%c0_57, %c0_58, %c0_59] {strides = array<i32: 1, 2, 1>} : memref<8x18x128xf32, #tpu.memory_space<vmem>>, vector<8x8x128xf32>
    %47 = vector.shape_cast %46 : vector<8x8x128xf32> to vector<64x128xf32>
    %c6 = arith.constant 6 : index
    %c0_60 = arith.constant 0 : index
    %c0_61 = arith.constant 0 : index
    %48 = vector.load %arg4[%c6, %c0_60, %c0_61] : memref<9x128x128xf32, #tpu.memory_space<vmem>>, vector<1x128x128xf32>
    %49 = vector.shape_cast %48 : vector<1x128x128xf32> to vector<128x128xf32>
    %cst_62 = arith.constant dense<0.000000e+00> : vector<64x128xf32>
    %50 = tpu.matmul %47, %49, %cst_62 {dimension_numbers = #tpu.dot_dimension_numbers<[1], [0], [0], [1], [0, 0, 1, 1], [], []>} : vector<64x128xf32>, vector<128x128xf32>, vector<64x128xf32> -> vector<64x128xf32>
    %c0_63 = arith.constant 0 : index
    %c0_64 = arith.constant 0 : index
    %51 = vector.load %arg7[%c0_63, %c0_64] : memref<64x128xf32, #tpu.memory_space<vmem>>, vector<64x128xf32>
    %52 = arith.addf %51, %50 : vector<64x128xf32>
    %c0_65 = arith.constant 0 : index
    %c0_66 = arith.constant 0 : index
    %53 = vector.load %arg7[%c0_65, %c0_66] : memref<64x128xf32, #tpu.memory_space<vmem>>, vector<64x128xf32>
    tpu.vector_store %arg7[%c0_65, %c0_66], %52 {strides = array<i32>} : memref<64x128xf32, #tpu.memory_space<vmem>>, vector<64x128xf32>,
    %c0_67 = arith.constant 0 : index
    %c1_68 = arith.constant 1 : index
    %c0_69 = arith.constant 0 : index
    %54 = tpu.strided_load %arg3[%c0_67, %c1_68, %c0_69] {strides = array<i32: 1, 2, 1>} : memref<8x18x128xf32, #tpu.memory_space<vmem>>, vector<8x8x128xf32>
    %55 = vector.shape_cast %54 : vector<8x8x128xf32> to vector<64x128xf32>
    %c7 = arith.constant 7 : index
    %c0_70 = arith.constant 0 : index
    %c0_71 = arith.constant 0 : index
    %56 = vector.load %arg4[%c7, %c0_70, %c0_71] : memref<9x128x128xf32, #tpu.memory_space<vmem>>, vector<1x128x128xf32>
    %57 = vector.shape_cast %56 : vector<1x128x128xf32> to vector<128x128xf32>
    %cst_72 = arith.constant dense<0.000000e+00> : vector<64x128xf32>
    %58 = tpu.matmul %55, %57, %cst_72 {dimension_numbers = #tpu.dot_dimension_numbers<[1], [0], [0], [1], [0, 0, 1, 1], [], []>} : vector<64x128xf32>, vector<128x128xf32>, vector<64x128xf32> -> vector<64x128xf32>
    %c0_73 = arith.constant 0 : index
    %c0_74 = arith.constant 0 : index
    %59 = vector.load %arg7[%c0_73, %c0_74] : memref<64x128xf32, #tpu.memory_space<vmem>>, vector<64x128xf32>
    %60 = arith.addf %59, %58 : vector<64x128xf32>
    %c0_75 = arith.constant 0 : index
    %c0_76 = arith.constant 0 : index
    %61 = vector.load %arg7[%c0_75, %c0_76] : memref<64x128xf32, #tpu.memory_space<vmem>>, vector<64x128xf32>
    tpu.vector_store %arg7[%c0_75, %c0_76], %60 {strides = array<i32>} : memref<64x128xf32, #tpu.memory_space<vmem>>, vector<64x128xf32>,
    %c0_77 = arith.constant 0 : index
    %c2_78 = arith.constant 2 : index
    %c0_79 = arith.constant 0 : index
    %62 = tpu.strided_load %arg3[%c0_77, %c2_78, %c0_79] {strides = array<i32: 1, 2, 1>} : memref<8x18x128xf32, #tpu.memory_space<vmem>>, vector<8x8x128xf32>
    %63 = vector.shape_cast %62 : vector<8x8x128xf32> to vector<64x128xf32>
    %c8 = arith.constant 8 : index
    %c0_80 = arith.constant 0 : index
    %c0_81 = arith.constant 0 : index
    %64 = vector.load %arg4[%c8, %c0_80, %c0_81] : memref<9x128x128xf32, #tpu.memory_space<vmem>>, vector<1x128x128xf32>
    %65 = vector.shape_cast %64 : vector<1x128x128xf32> to vector<128x128xf32>
    %cst_82 = arith.constant dense<0.000000e+00> : vector<64x128xf32>
    %66 = tpu.matmul %63, %65, %cst_82 {dimension_numbers = #tpu.dot_dimension_numbers<[1], [0], [0], [1], [0, 0, 1, 1], [], []>} : vector<64x128xf32>, vector<128x128xf32>, vector<64x128xf32> -> vector<64x128xf32>
    %c0_83 = arith.constant 0 : index
    %c0_84 = arith.constant 0 : index
    %67 = vector.load %arg7[%c0_83, %c0_84] : memref<64x128xf32, #tpu.memory_space<vmem>>, vector<64x128xf32>
    %68 = arith.addf %67, %66 : vector<64x128xf32>
    %c0_85 = arith.constant 0 : index
    %c0_86 = arith.constant 0 : index
    %69 = vector.load %arg7[%c0_85, %c0_86] : memref<64x128xf32, #tpu.memory_space<vmem>>, vector<64x128xf32>
    tpu.vector_store %arg7[%c0_85, %c0_86], %68 {strides = array<i32>} : memref<64x128xf32, #tpu.memory_space<vmem>>, vector<64x128xf32>,
    %c0_87 = arith.constant 0 : index
    %c0_88 = arith.constant 0 : index
    %70 = vector.load %arg7[%c0_87, %c0_88] : memref<64x128xf32, #tpu.memory_space<vmem>>, vector<64x128xf32>
    %c0_89 = arith.constant 0 : index
    %c0_90 = arith.constant 0 : index
    %71 = vector.load %arg5[%c0_89, %c0_90] : memref<1x128xf32, #tpu.memory_space<vmem>>, vector<1x128xf32>
    %72 = vector.broadcast %71 : vector<1x128xf32> to vector<64x128xf32>
    %73 = arith.addf %70, %72 : vector<64x128xf32>
    %c0_91 = arith.constant 0 : index
    %c0_92 = arith.constant 0 : index
    %74 = vector.load %arg6[%c0_91, %c0_92] : memref<64x128xf32, #tpu.memory_space<vmem>>, vector<64x128xf32>
    tpu.vector_store %arg6[%c0_91, %c0_92], %73 {strides = array<i32>} : memref<64x128xf32, #tpu.memory_space<vmem>>, vector<64x128xf32>,
    return
  }
  func.func @transform_0(%arg0: i32) -> (i32, i32, i32) {
    %c0_i32 = arith.constant 0 : i32
    %c0_i32_0 = arith.constant 0 : i32
    %c0_i32_1 = arith.constant 0 : i32
    return %arg0, %c0_i32, %c0_i32_0 : i32, i32, i32
  }
  func.func @transform_1(%arg0: i32) -> (i32, i32, i32) {
    %c0_i32 = arith.constant 0 : i32
    %c0_i32_0 = arith.constant 0 : i32
    %c0_i32_1 = arith.constant 0 : i32
    return %arg0, %c0_i32, %c0_i32_0 : i32, i32, i32
  }
  func.func @transform_2(%arg0: i32) -> (i32, i32, i32) {
    %c0_i32 = arith.constant 0 : i32
    %c0_i32_0 = arith.constant 0 : i32
    %c0_i32_1 = arith.constant 0 : i32
    return %arg0, %c0_i32, %c0_i32_0 : i32, i32, i32
  }
  func.func @transform_3(%arg0: i32) -> (i32, i32, i32) {
    %c0_i32 = arith.constant 0 : i32
    %c0_i32_0 = arith.constant 0 : i32
    %c0_i32_1 = arith.constant 0 : i32
    %c0_i32_2 = arith.constant 0 : i32
    return %c0_i32, %c0_i32_0, %c0_i32_1 : i32, i32, i32
  }
  func.func @transform_4(%arg0: i32) -> (i32, i32) {
    %c0_i32 = arith.constant 0 : i32
    %c0_i32_0 = arith.constant 0 : i32
    %c0_i32_1 = arith.constant 0 : i32
    return %c0_i32, %c0_i32_0 : i32, i32
  }
  func.func @transform_5(%arg0: i32) -> (i32, i32) {
    %c0_i32 = arith.constant 0 : i32
    %c0_i32_0 = arith.constant 0 : i32
    return %arg0, %c0_i32 : i32, i32
  }
}

</mosaic_0001>

<llo_original>
// kernel: _conv2d_nhwc_impl.1
$region0: #{_conv2d_nhwc_impl.1}
  #allocation0 [shape = 'u32[]', space=smem, size = 0x4, offset = 0x4, fixed_abs, tag = 'smem constant byte address 0x4 - core index']
  #allocation1 [shape = 'u32[144,128]{1,0:T(1,128)}', space=vmem, size = 0x12000, scoped, tag = 'internal scratch']
  #allocation2 [shape = 'f32[64,128]{1,0:T(8,128)}', space=vmem, size = 0x8000, scoped, tag = 'scratch operand']
  %s0 = inlined_call_operand.vmem [shape: f32[16,18,128], index: 0, kind: input, shape index: {}]
  %s1 = inlined_call_operand.vmem [shape: f32[16,18,128], index: 1, kind: input, shape index: {}]
  %s2 = inlined_call_operand.vmem [shape: f32[16,18,128], index: 2, kind: input, shape index: {}]
  %s3 = inlined_call_operand.vmem [shape: f32[9,128,128], index: 3, kind: input, shape index: {}]
  %s4 = inlined_call_operand.vmem [shape: f32[1,128], index: 4, kind: input, shape index: {}]
  %s5 = inlined_call_operand.vmem [shape: f32[128,128], index: 5, kind: output, shape index: {}]
  %s6 = sld [smem:[#allocation0]]
  $region53: #{_conv2d_nhwc_impl.1} parent=0
    _
  %s8 = ssub.s32 1, %s6
  %s9 = scalar_select 0, %s8, %s6
  loop: start=0, step=1, limit=4
  $region2: #{_conv2d_nhwc_impl.1} parent=0 // loop_pre_header
    _
  $region3: #{_conv2d_nhwc_impl.1} parent=0 // loop_header
    %s11 = sphi 0, %s15
    %p12 = scmp.ge.s32.totalorder %s11, 4
    %s21 = sphi 0, %s23
    %s24 = sphi 0, %s21
    %s25 = sphi 0, %s24
    %s41 = sphi 0, %s25
    %s47 = sphi 0, %s49
    %s50 = sphi 0, %s47
    %s51 = sphi 0, %s50
    %s67 = sphi 0, %s51
    %s73 = sphi 0, %s75
    %s76 = sphi 0, %s73
    %s77 = sphi 0, %s76
    %s93 = sphi 0, %s77
    %s97 = sphi 0, %s97
    %s99 = sphi 0, %s97
    %s100 = sphi 0, %s99
    %s114 = sphi 0, %s100
    %s118 = sphi 0, %s118
    %s120 = sphi 0, %s118
    %s121 = sphi 0, %s120
    %s135 = sphi 0, %s121
    %s141 = sphi 0, %s143
    %s144 = sphi 0, %s141
    %s145 = sphi 0, %s144
    %s161 = sphi 0, %s145
  $region4: #{_conv2d_nhwc_impl.1} parent=0 // loop_header_branch
    %14 = sbr.rel (%p12) target = $region8
  $region5: #{_conv2d_nhwc_impl.1} parent=0 // loop_body
    %s16 = ssub.s32 %s11, 1
    %s17 = ssub.s32 %s11, 2
    %s18 = sadd.s32 %s11, 1
    %s19 = ssub.s32 %s11, %s18
    %p20 = scmp.eq.s32.totalorder %s19, 0
    %s22 = sadd.s32 %s21, 1
    %s23 = scalar_select %p20, %s21, %s22
    %p26 = pneg %p20
    %p27 = scmp.eq.s32.totalorder %s11, 1
    %p28 = por %p26, %p27
    %p29 = scmp.ne.s32.totalorder %s21, %s24
    %p30 = scmp.eq.s32.totalorder %s11, 0
    %p31 = por %p29, %p30
    %p32 = scmp.ne.s32.totalorder %s21, %s24
    %p33 = scmp.eq.s32.totalorder %s16, 1
    %p34 = por %p32, %p33
    %p35 = scmp.ne.s32.totalorder %s24, %s25
    %p36 = scmp.eq.s32.totalorder %s16, 0
    %p37 = por %p35, %p36
    %p38 = scmp.ne.s32.totalorder %s24, %s25
    %p39 = scmp.eq.s32.totalorder %s17, 1
    %p40 = por %p38, %p39
    %p42 = scmp.ne.s32.totalorder %s25, %s41
    %p43 = scmp.eq.s32.totalorder %s17, 0
    %p44 = por %p42, %p43
    %s45 = ssub.s32 %s11, %s18
    %p46 = scmp.eq.s32.totalorder %s45, 0
    %s48 = sadd.s32 %s47, 1
    %s49 = scalar_select %p46, %s47, %s48
    %p52 = pneg %p46
    %p53 = scmp.eq.s32.totalorder %s11, 1
    %p54 = por %p52, %p53
    %p55 = scmp.ne.s32.totalorder %s47, %s50
    %p56 = scmp.eq.s32.totalorder %s11, 0
    %p57 = por %p55, %p56
    %p58 = scmp.ne.s32.totalorder %s47, %s50
    %p59 = scmp.eq.s32.totalorder %s16, 1
    %p60 = por %p58, %p59
    %p61 = scmp.ne.s32.totalorder %s50, %s51
    %p62 = scmp.eq.s32.totalorder %s16, 0
    %p63 = por %p61, %p62
    %p64 = scmp.ne.s32.totalorder %s50, %s51
    %p65 = scmp.eq.s32.totalorder %s17, 1
    %p66 = por %p64, %p65
    %p68 = scmp.ne.s32.totalorder %s51, %s67
    %p69 = scmp.eq.s32.totalorder %s17, 0
    %p70 = por %p68, %p69
    %s71 = ssub.s32 %s11, %s18
    %p72 = scmp.eq.s32.totalorder %s71, 0
    %s74 = sadd.s32 %s73, 1
    %s75 = scalar_select %p72, %s73, %s74
    %p78 = pneg %p72
    %p79 = scmp.eq.s32.totalorder %s11, 1
    %p80 = por %p78, %p79
    %p81 = scmp.ne.s32.totalorder %s73, %s76
    %p82 = scmp.eq.s32.totalorder %s11, 0
    %p83 = por %p81, %p82
    %p84 = scmp.ne.s32.totalorder %s73, %s76
    %p85 = scmp.eq.s32.totalorder %s16, 1
    %p86 = por %p84, %p85
    %p87 = scmp.ne.s32.totalorder %s76, %s77
    %p88 = scmp.eq.s32.totalorder %s16, 0
    %p89 = por %p87, %p88
    %p90 = scmp.ne.s32.totalorder %s76, %s77
    %p91 = scmp.eq.s32.totalorder %s17, 1
    %p92 = por %p90, %p91
    %p94 = scmp.ne.s32.totalorder %s77, %s93
    %p95 = scmp.eq.s32.totalorder %s17, 0
    %p96 = por %p94, %p95
    %s98 = sadd.s32 %s97, 1
    %p101 = scmp.eq.s32.totalorder %s11, 1
    %p102 = scmp.ne.s32.totalorder %s97, %s99
    %p103 = scmp.eq.s32.totalorder %s11, 0
    %p104 = por %p102, %p103
    %p105 = scmp.ne.s32.totalorder %s97, %s99
    %p106 = scmp.eq.s32.totalorder %s16, 1
    %p107 = por %p105, %p106
    %p108 = scmp.ne.s32.totalorder %s99, %s100
    %p109 = scmp.eq.s32.totalorder %s16, 0
    %p110 = por %p108, %p109
    %p111 = scmp.ne.s32.totalorder %s99, %s100
    %p112 = scmp.eq.s32.totalorder %s17, 1
    %p113 = por %p111, %p112
    %p115 = scmp.ne.s32.totalorder %s100, %s114
    %p116 = scmp.eq.s32.totalorder %s17, 0
    %p117 = por %p115, %p116
    %s119 = sadd.s32 %s118, 1
    %p122 = scmp.eq.s32.totalorder %s11, 1
    %p123 = scmp.ne.s32.totalorder %s118, %s120
    %p124 = scmp.eq.s32.totalorder %s11, 0
    %p125 = por %p123, %p124
    %p126 = scmp.ne.s32.totalorder %s118, %s120
    %p127 = scmp.eq.s32.totalorder %s16, 1
    %p128 = por %p126, %p127
    %p129 = scmp.ne.s32.totalorder %s120, %s121
    %p130 = scmp.eq.s32.totalorder %s16, 0
    %p131 = por %p129, %p130
    %p132 = scmp.ne.s32.totalorder %s120, %s121
    %p133 = scmp.eq.s32.totalorder %s17, 1
    %p134 = por %p132, %p133
    %p136 = scmp.ne.s32.totalorder %s121, %s135
    %p137 = scmp.eq.s32.totalorder %s17, 0
    %p138 = por %p136, %p137
    %s139 = ssub.s32 %s11, %s18
    %p140 = scmp.eq.s32.totalorder %s139, 0
    %s142 = sadd.s32 %s141, 1
    %s143 = scalar_select %p140, %s141, %s142
    %p146 = pneg %p140
    %p147 = scmp.eq.s32.totalorder %s11, 1
    %p148 = por %p146, %p147
    %p149 = scmp.ne.s32.totalorder %s141, %s144
    %p150 = scmp.eq.s32.totalorder %s11, 0
    %p151 = por %p149, %p150
    %p152 = scmp.ne.s32.totalorder %s141, %s144
    %p153 = scmp.eq.s32.totalorder %s16, 1
    %p154 = por %p152, %p153
    %p155 = scmp.ne.s32.totalorder %s144, %s145
    %p156 = scmp.eq.s32.totalorder %s16, 0
    %p157 = por %p155, %p156
    %p158 = scmp.ne.s32.totalorder %s144, %s145
    %p159 = scmp.eq.s32.totalorder %s17, 1
    %p160 = por %p158, %p159
    %p162 = scmp.ne.s32.totalorder %s145, %s161
    %p163 = scmp.eq.s32.totalorder %s17, 0
    %p164 = por %p162, %p163
    %p165 = scmp.le.s32.totalorder 1, %s11
    %p166 = scmp.lt.s32.totalorder %s11, 3
    %p167 = pnand %p165, %p166
    %p168 = pneg %p167
    // Predicated region
    $region9: #{_conv2d_nhwc_impl.1} parent=5 // pred_check
      _
    $region10: #{_conv2d_nhwc_impl.1} parent=5 // pred_check_branch
      %170 = sbr.rel (%p167) target = $region12
    $region11: #{_conv2d_nhwc_impl.1} parent=5 // pred_region
      %s171 = ssub.s32 %s11, 1
      // Predicated region
      $region13: #{_conv2d_nhwc_impl.1} parent=11 // pred_check
        %p172 = pneg %p110
      $region14: #{_conv2d_nhwc_impl.1} parent=11 // pred_check_branch
        %174 = sbr.rel (%p172) target = $region16
      $region15: #{_conv2d_nhwc_impl.1} parent=11 // pred_region
        _
      $region16: #{_conv2d_nhwc_impl.1} parent=11 // pred_fallthru
        _
      // Predicated region
      $region17: #{_conv2d_nhwc_impl.1} parent=11 // pred_check
        %p175 = pneg %p131
      $region18: #{_conv2d_nhwc_impl.1} parent=11 // pred_check_branch
        %177 = sbr.rel (%p175) target = $region20
      $region19: #{_conv2d_nhwc_impl.1} parent=11 // pred_region
        _
      $region20: #{_conv2d_nhwc_impl.1} parent=11 // pred_fallthru
        _
    $region12: #{_conv2d_nhwc_impl.1} parent=5 // pred_fallthru
      _
    %p178 = scmp.lt.s32.totalorder %s11, 2
    // Predicated region
    $region21: #{_conv2d_nhwc_impl.1} parent=5 // pred_check
      %p179 = pneg %p178
    $region22: #{_conv2d_nhwc_impl.1} parent=5 // pred_check_branch
      %181 = sbr.rel (%p179) target = $region24
    $region23: #{_conv2d_nhwc_impl.1} parent=5 // pred_region
      // Predicated region
      $region25: #{_conv2d_nhwc_impl.1} parent=23 // pred_check
        %p182 = pneg %p31
      $region26: #{_conv2d_nhwc_impl.1} parent=23 // pred_check_branch
        %184 = sbr.rel (%p182) target = $region28
      $region27: #{_conv2d_nhwc_impl.1} parent=23 // pred_region
        %s185 = smul.u32 8, %s11
        %p186 = scmp.lt.s32.totalorder %s185, 15
        %s187 = scalar_select %p186, %s185, 15
        %s188 = smul.addr %s187, 3
        %s189 = smul.addr %s188, 8
        %s190 = scalar_lea.vmem %s0, %s189
        %s191 = smul.u32 8, %s11
      $region28: #{_conv2d_nhwc_impl.1} parent=23 // pred_fallthru
        _
      // Predicated region
      $region29: #{_conv2d_nhwc_impl.1} parent=23 // pred_check
        %p192 = pneg %p57
      $region30: #{_conv2d_nhwc_impl.1} parent=23 // pred_check_branch
        %194 = sbr.rel (%p192) target = $region32
      $region31: #{_conv2d_nhwc_impl.1} parent=23 // pred_region
        %s195 = smul.u32 8, %s11
        %p196 = scmp.lt.s32.totalorder %s195, 15
        %s197 = scalar_select %p196, %s195, 15
        %s198 = smul.addr %s197, 3
        %s199 = smul.addr %s198, 8
        %s200 = scalar_lea.vmem %s1, %s199
        %s201 = smul.u32 8, %s11
      $region32: #{_conv2d_nhwc_impl.1} parent=23 // pred_fallthru
        _
      // Predicated region
      $region33: #{_conv2d_nhwc_impl.1} parent=23 // pred_check
        %p202 = pneg %p83
      $region34: #{_conv2d_nhwc_impl.1} parent=23 // pred_check_branch
        %204 = sbr.rel (%p202) target = $region36
      $region35: #{_conv2d_nhwc_impl.1} parent=23 // pred_region
        %s205 = smul.u32 8, %s11
        %p206 = scmp.lt.s32.totalorder %s205, 15
        %s207 = scalar_select %p206, %s205, 15
        %s208 = smul.addr %s207, 3
        %s209 = smul.addr %s208, 8
        %s210 = scalar_lea.vmem %s2, %s209
        %s211 = smul.u32 8, %s11
      $region36: #{_conv2d_nhwc_impl.1} parent=23 // pred_fallthru
        _
    $region24: #{_conv2d_nhwc_impl.1} parent=5 // pred_fallthru
      _
    %p212 = scmp.le.s32.totalorder 1, %s11
    %p213 = scmp.lt.s32.totalorder %s11, 3
    %p214 = pnand %p212, %p213
    %p215 = pneg %p214
    // Predicated region
    $region37: #{_conv2d_nhwc_impl.1} parent=5 // pred_check
      _
    $region38: #{_conv2d_nhwc_impl.1} parent=5 // pred_check_branch
      %217 = sbr.rel (%p214) target = $region40
    $region39: #{_conv2d_nhwc_impl.1} parent=5 // pred_region
      %s218 = ssub.s32 %s11, 1
      %s219 = smul.u32 8, %s16
      %p220 = scmp.lt.s32.totalorder %s219, 15
      %s221 = scalar_select %p220, %s219, 15
      %s222 = smul.addr %s221, 3
      %s223 = smul.addr %s222, 8
      %s224 = scalar_lea.vmem %s0, %s223
      %p225 = pneg %p37
      %p226 = pneg %p34
      %s227 = smul.u32 8, %s16
      %p228 = scmp.lt.s32.totalorder %s227, 15
      %s229 = scalar_select %p228, %s227, 15
      %s230 = smul.addr %s229, 3
      %s231 = smul.addr %s230, 8
      %s232 = scalar_lea.vmem %s1, %s231
      %p233 = pneg %p63
      %p234 = pneg %p60
      %s235 = smul.u32 8, %s16
      %p236 = scmp.lt.s32.totalorder %s235, 15
      %s237 = scalar_select %p236, %s235, 15
      %s238 = smul.addr %s237, 3
      %s239 = smul.addr %s238, 8
      %s240 = scalar_lea.vmem %s2, %s239
      %p241 = pneg %p89
      %p242 = pneg %p86
      %p243 = pneg %p110
      %p244 = pneg %p107
      %p245 = pneg %p131
      %p246 = pneg %p128
      %p247 = pneg %p157
      %p248 = pneg %p154
      %s249 = smul.u32 8, %s16
      %p250 = scmp.lt.s32.totalorder %s249, 15
      %s251 = scalar_select %p250, %s249, 15
      %s252 = smul.addr %s251, 8
      %s253 = scalar_lea.vmem %s5, %s252
      %s254 = smul.u32 8, %s16
      %p255 = scmp.lt.s32.totalorder %s254, 15
      %s256 = scalar_select %p255, %s254, 15
      %s257 = smul.addr %s256, 3
      %s258 = smul.addr %s257, 8
      %s259 = scalar_lea.vmem %s0, %s258
      %s260 = smul.u32 8, %s16
      %s261 = smul.u32 8, %s16
      %p262 = scmp.lt.s32.totalorder %s261, 15
      %s263 = scalar_select %p262, %s261, 15
      %s264 = smul.addr %s263, 3
      %s265 = smul.addr %s264, 8
      %s266 = scalar_lea.vmem %s1, %s265
      %s267 = smul.u32 8, %s16
      %s268 = smul.u32 8, %s16
      %p269 = scmp.lt.s32.totalorder %s268, 15
      %s270 = scalar_select %p269, %s268, 15
      %s271 = smul.addr %s270, 3
      %s272 = smul.addr %s271, 8
      %s273 = scalar_lea.vmem %s2, %s272
      %s274 = smul.u32 8, %s16
      %s275 = smul.u32 8, %s16
      %p276 = scmp.lt.s32.totalorder %s275, 15
      %s277 = scalar_select %p276, %s275, 15
      %s278 = smul.addr %s277, 8
      %s279 = scalar_lea.vmem %s5, %s278
      %s280 = smul.u32 8, %s16
      %v281 = vld [vmem:[%s259] ss:$2 sm:$0xff]
      %s282 = scalar_lea.vmem %s259, 24
      %v283 = vld [vmem:[%s282] ss:$2 sm:$0xff]
      %s284 = scalar_lea.vmem %s259, 48
      %v285 = vld [vmem:[%s284] ss:$2 sm:$0xff]
      %s286 = scalar_lea.vmem %s259, 72
      %v287 = vld [vmem:[%s286] ss:$2 sm:$0xff]
      %s288 = scalar_lea.vmem %s259, 96
      %v289 = vld [vmem:[%s288] ss:$2 sm:$0xff]
      %s290 = scalar_lea.vmem %s259, 120
      %v291 = vld [vmem:[%s290] ss:$2 sm:$0xff]
      %s292 = scalar_lea.vmem %s259, 144
      %v293 = vld [vmem:[%s292] ss:$2 sm:$0xff]
      %s294 = scalar_lea.vmem %s259, 168
      %v295 = vld [vmem:[%s294] ss:$2 sm:$0xff]
      %v296 = vld [vmem:[%s3] sm:$0xff]
      %v297 = vld [vmem:[%s3 + $0x8] sm:$0xff]
      %v298 = vld [vmem:[%s3 + $0x10] sm:$0xff]
      %v299 = vld [vmem:[%s3 + $0x18] sm:$0xff]
      %v300 = vld [vmem:[%s3 + $0x20] sm:$0xff]
      %v301 = vld [vmem:[%s3 + $0x28] sm:$0xff]
      %v302 = vld [vmem:[%s3 + $0x30] sm:$0xff]
      %v303 = vld [vmem:[%s3 + $0x38] sm:$0xff]
      %v304 = vld [vmem:[%s3 + $0x40] sm:$0xff]
      %v305 = vld [vmem:[%s3 + $0x48] sm:$0xff]
      %v306 = vld [vmem:[%s3 + $0x50] sm:$0xff]
      %v307 = vld [vmem:[%s3 + $0x58] sm:$0xff]
      %v308 = vld [vmem:[%s3 + $0x60] sm:$0xff]
      %v309 = vld [vmem:[%s3 + $0x68] sm:$0xff]
      %v310 = vld [vmem:[%s3 + $0x70] sm:$0xff]
      %v311 = vld [vmem:[%s3 + $0x78] sm:$0xff]
      %312 = vmatprep.subr.mxu0 0.0
      %313 = vmatpush1.msra.mxu0 %v296
      %314 = vmatprep.subr.mxu0 0.0
      %315 = vmatpush1.msra.mxu0 %v297
      %316 = vmatprep.subr.mxu0 0.0
      %317 = vmatpush1.msra.mxu0 %v298
      %318 = vmatprep.subr.mxu0 0.0
      %319 = vmatpush1.msra.mxu0 %v299
      %320 = vmatprep.subr.mxu0 0.0
      %321 = vmatpush1.msra.mxu0 %v300
      %322 = vmatprep.subr.mxu0 0.0
      %323 = vmatpush1.msra.mxu0 %v301
      %324 = vmatprep.subr.mxu0 0.0
      %325 = vmatpush1.msra.mxu0 %v302
      %326 = vmatprep.subr.mxu0 0.0
      %327 = vmatpush1.msra.mxu0 %v303
      %328 = vmatprep.subr.mxu0 0.0
      %329 = vmatpush1.msra.mxu0 %v304
      %330 = vmatprep.subr.mxu0 0.0
      %331 = vmatpush1.msra.mxu0 %v305
      %332 = vmatprep.subr.mxu0 0.0
      %333 = vmatpush1.msra.mxu0 %v306
      %334 = vmatprep.subr.mxu0 0.0
      %335 = vmatpush1.msra.mxu0 %v307
      %336 = vmatprep.subr.mxu0 0.0
      %337 = vmatpush1.msra.mxu0 %v308
      %338 = vmatprep.subr.mxu0 0.0
      %339 = vmatpush1.msra.mxu0 %v309
      %340 = vmatprep.subr.mxu0 0.0
      %341 = vmatpush1.msra.mxu0 %v310
      %342 = vmatprep.subr.mxu0 0.0
      %343 = vmatpush1.msra.mxu0 %v311
      %344 = vmatprep.subr.mxu0 0.0
      %345 = vmatpush1.msra.mxu0 0.0
      %346 = vmatprep.subr.mxu0 0.0
      %347 = vmatpush1.msra.mxu0 0.0
      %348 = vmatprep.subr.mxu0 0.0
      %349 = vmatpush1.msra.mxu0 0.0
      %350 = vmatprep.subr.mxu0 0.0
      %351 = vmatpush1.msra.mxu0 0.0
      %352 = vmatprep.subr.mxu0 0.0
      %353 = vmatpush1.msra.mxu0 0.0
      %354 = vmatprep.subr.mxu0 0.0
      %355 = vmatpush1.msra.mxu0 0.0
      %356 = vmatprep.subr.mxu0 0.0
      %357 = vmatpush1.msra.mxu0 0.0
      %358 = vmatprep.subr.mxu0 0.0
      %359 = vmatpush1.msra.mxu0 0.0
      %360 = vmatprep.subr.mxu0 0.0
      %361 = vmatpush1.msra.mxu0 0.0
      %362 = vmatprep.subr.mxu0 0.0
      %363 = vmatpush1.msra.mxu0 0.0
      %364 = vmatprep.subr.mxu0 0.0
      %365 = vmatpush1.msra.mxu0 0.0
      %366 = vmatprep.subr.mxu0 0.0
      %367 = vmatpush1.msra.mxu0 0.0
      %368 = vmatprep.subr.mxu0 0.0
      %369 = vmatpush1.msra.mxu0 0.0
      %370 = vmatprep.subr.mxu0 0.0
      %371 = vmatpush1.msra.mxu0 0.0
      %372 = vmatprep.subr.mxu0 0.0
      %373 = vmatpush1.msra.mxu0 0.0
      %374 = vmatprep.subr.mxu0 0.0
      %375 = vmatpush1.msra.mxu0 0.0
      %376 = vmatprep.mubr.f32.mxu0 0.0
      %377 = vmatmul.mubr.f32.gmra.mrb[0].mxu0 %v281
      %v378 = vpop.f32.mrb[0].mxu0
      %v379 = vadd.f32 0.0, %v378
      %v380 = vpop.f32.mrb[0].mxu0
      %381 = vmatprep.mubr.f32.mxu0 0.0
      %382 = vmatmul.mubr.f32.gmra.mrb[0].mxu0 %v283
      %v383 = vpop.f32.mrb[0].mxu0
      %v384 = vadd.f32 0.0, %v383
      %v385 = vpop.f32.mrb[0].mxu0
      %386 = vmatprep.mubr.f32.mxu0 0.0
      %387 = vmatmul.mubr.f32.gmra.mrb[0].mxu0 %v285
      %v388 = vpop.f32.mrb[0].mxu0
      %v389 = vadd.f32 0.0, %v388
      %v390 = vpop.f32.mrb[0].mxu0
      %391 = vmatprep.mubr.f32.mxu0 0.0
      %392 = vmatmul.mubr.f32.gmra.mrb[0].mxu0 %v287
      %v393 = vpop.f32.mrb[0].mxu0
      %v394 = vadd.f32 0.0, %v393
      %v395 = vpop.f32.mrb[0].mxu0
      %396 = vmatprep.mubr.f32.mxu0 0.0
      %397 = vmatmul.mubr.f32.gmra.mrb[0].mxu0 %v289
      %v398 = vpop.f32.mrb[0].mxu0
      %v399 = vadd.f32 0.0, %v398
      %v400 = vpop.f32.mrb[0].mxu0
      %401 = vmatprep.mubr.f32.mxu0 0.0
      %402 = vmatmul.mubr.f32.gmra.mrb[0].mxu0 %v291
      %v403 = vpop.f32.mrb[0].mxu0
      %v404 = vadd.f32 0.0, %v403
      %v405 = vpop.f32.mrb[0].mxu0
      %406 = vmatprep.mubr.f32.mxu0 0.0
      %407 = vmatmul.mubr.f32.gmra.mrb[0].mxu0 %v293
      %v408 = vpop.f32.mrb[0].mxu0
      %v409 = vadd.f32 0.0, %v408
      %v410 = vpop.f32.mrb[0].mxu0
      %411 = vmatprep.mubr.f32.mxu0 0.0
      %412 = vmatmul.mubr.f32.gmra.mrb[0].mxu0 %v295
      %v413 = vpop.f32.mrb[0].mxu0
      %v414 = vadd.f32 0.0, %v413
      %v415 = vpop.f32.mrb[0].mxu0
      %416 = vdwg.mxu0
      %417 = vst [vmem:[#allocation2] sm:$0xff] %v379
      %418 = vst [vmem:[#allocation2 + $0x8] sm:$0xff] %v384
      %419 = vst [vmem:[#allocation2 + $0x10] sm:$0xff] %v389
      %420 = vst [vmem:[#allocation2 + $0x18] sm:$0xff] %v394
      %421 = vst [vmem:[#allocation2 + $0x20] sm:$0xff] %v399
      %422 = vst [vmem:[#allocation2 + $0x28] sm:$0xff] %v404
      %423 = vst [vmem:[#allocation2 + $0x30] sm:$0xff] %v409
      %424 = vst [vmem:[#allocation2 + $0x38] sm:$0xff] %v414
      %s425 = scalar_lea.vmem %s259, 1
      %v426 = vld [vmem:[%s425] ss:$2 sm:$0xff]
      %s427 = scalar_lea.vmem %s259, 25
      %v428 = vld [vmem:[%s427] ss:$2 sm:$0xff]
      %s429 = scalar_lea.vmem %s259, 49
      %v430 = vld [vmem:[%s429] ss:$2 sm:$0xff]
      %s431 = scalar_lea.vmem %s259, 73
      %v432 = vld [vmem:[%s431] ss:$2 sm:$0xff]
      %s433 = scalar_lea.vmem %s259, 97
      %v434 = vld [vmem:[%s433] ss:$2 sm:$0xff]
      %s435 = scalar_lea.vmem %s259, 121
      %v436 = vld [vmem:[%s435] ss:$2 sm:$0xff]
      %s437 = scalar_lea.vmem %s259, 145
      %v438 = vld [vmem:[%s437] ss:$2 sm:$0xff]
      %s439 = scalar_lea.vmem %s259, 169
      %v440 = vld [vmem:[%s439] ss:$2 sm:$0xff]
      %s441 = scalar_lea.vmem %s3, 128
      %v442 = vld [vmem:[%s441] sm:$0xff]
      %v443 = vld [vmem:[%s441 + $0x8] sm:$0xff]
      %v444 = vld [vmem:[%s441 + $0x10] sm:$0xff]
      %v445 = vld [vmem:[%s441 + $0x18] sm:$0xff]
      %v446 = vld [vmem:[%s441 + $0x20] sm:$0xff]
      %v447 = vld [vmem:[%s441 + $0x28] sm:$0xff]
      %v448 = vld [vmem:[%s441 + $0x30] sm:$0xff]
      %v449 = vld [vmem:[%s441 + $0x38] sm:$0xff]
      %v450 = vld [vmem:[%s441 + $0x40] sm:$0xff]
      %v451 = vld [vmem:[%s441 + $0x48] sm:$0xff]
      %v452 = vld [vmem:[%s441 + $0x50] sm:$0xff]
      %v453 = vld [vmem:[%s441 + $0x58] sm:$0xff]
      %v454 = vld [vmem:[%s441 + $0x60] sm:$0xff]
      %v455 = vld [vmem:[%s441 + $0x68] sm:$0xff]
      %v456 = vld [vmem:[%s441 + $0x70] sm:$0xff]
      %v457 = vld [vmem:[%s441 + $0x78] sm:$0xff]
      %458 = vmatprep.subr.mxu0 0.0
      %459 = vmatpush1.msra.mxu0 %v442
      %460 = vmatprep.subr.mxu0 0.0
      %461 = vmatpush1.msra.mxu0 %v443
      %462 = vmatprep.subr.mxu0 0.0
      %463 = vmatpush1.msra.mxu0 %v444
      %464 = vmatprep.subr.mxu0 0.0
      %465 = vmatpush1.msra.mxu0 %v445
      %466 = vmatprep.subr.mxu0 0.0
      %467 = vmatpush1.msra.mxu0 %v446
      %468 = vmatprep.subr.mxu0 0.0
      %469 = vmatpush1.msra.mxu0 %v447
      %470 = vmatprep.subr.mxu0 0.0
      %471 = vmatpush1.msra.mxu0 %v448
      %472 = vmatprep.subr.mxu0 0.0
      %473 = vmatpush1.msra.mxu0 %v449
      %474 = vmatprep.subr.mxu0 0.0
      %475 = vmatpush1.msra.mxu0 %v450
      %476 = vmatprep.subr.mxu0 0.0
      %477 = vmatpush1.msra.mxu0 %v451
      %478 = vmatprep.subr.mxu0 0.0
      %479 = vmatpush1.msra.mxu0 %v452
      %480 = vmatprep.subr.mxu0 0.0
      %481 = vmatpush1.msra.mxu0 %v453
      %482 = vmatprep.subr.mxu0 0.0
      %483 = vmatpush1.msra.mxu0 %v454
      %484 = vmatprep.subr.mxu0 0.0
      %485 = vmatpush1.msra.mxu0 %v455
      %486 = vmatprep.subr.mxu0 0.0
      %487 = vmatpush1.msra.mxu0 %v456
      %488 = vmatprep.subr.mxu0 0.0
      %489 = vmatpush1.msra.mxu0 %v457
      %490 = vmatprep.subr.mxu0 0.0
      %491 = vmatpush1.msra.mxu0 0.0
      %492 = vmatprep.subr.mxu0 0.0
      %493 = vmatpush1.msra.mxu0 0.0
      %494 = vmatprep.subr.mxu0 0.0
      %495 = vmatpush1.msra.mxu0 0.0
      %496 = vmatprep.subr.mxu0 0.0
      %497 = vmatpush1.msra.mxu0 0.0
      %498 = vmatprep.subr.mxu0 0.0
      %499 = vmatpush1.msra.mxu0 0.0
      %500 = vmatprep.subr.mxu0 0.0
      %501 = vmatpush1.msra.mxu0 0.0
      %502 = vmatprep.subr.mxu0 0.0
      %503 = vmatpush1.msra.mxu0 0.0
      %504 = vmatprep.subr.mxu0 0.0
      %505 = vmatpush1.msra.mxu0 0.0
      %506 = vmatprep.subr.mxu0 0.0
      %507 = vmatpush1.msra.mxu0 0.0
      %508 = vmatprep.subr.mxu0 0.0
      %509 = vmatpush1.msra.mxu0 0.0
      %510 = vmatprep.subr.mxu0 0.0
      %511 = vmatpush1.msra.mxu0 0.0
      %512 = vmatprep.subr.mxu0 0.0
      %513 = vmatpush1.msra.mxu0 0.0
      %514 = vmatprep.subr.mxu0 0.0
      %515 = vmatpush1.msra.mxu0 0.0
      %516 = vmatprep.subr.mxu0 0.0
      %517 = vmatpush1.msra.mxu0 0.0
      %518 = vmatprep.subr.mxu0 0.0
      %519 = vmatpush1.msra.mxu0 0.0
      %520 = vmatprep.subr.mxu0 0.0
      %521 = vmatpush1.msra.mxu0 0.0
      %522 = vmatprep.mubr.f32.mxu0 0.0
      %523 = vmatmul.mubr.f32.gmra.mrb[0].mxu0 %v426
      %v524 = vpop.f32.mrb[0].mxu0
      %v525 = vadd.f32 0.0, %v524
      %v526 = vpop.f32.mrb[0].mxu0
      %527 = vmatprep.mubr.f32.mxu0 0.0
      %528 = vmatmul.mubr.f32.gmra.mrb[0].mxu0 %v428
      %v529 = vpop.f32.mrb[0].mxu0
      %v530 = vadd.f32 0.0, %v529
      %v531 = vpop.f32.mrb[0].mxu0
      %532 = vmatprep.mubr.f32.mxu0 0.0
      %533 = vmatmul.mubr.f32.gmra.mrb[0].mxu0 %v430
      %v534 = vpop.f32.mrb[0].mxu0
      %v535 = vadd.f32 0.0, %v534
      %v536 = vpop.f32.mrb[0].mxu0
      %537 = vmatprep.mubr.f32.mxu0 0.0
      %538 = vmatmul.mubr.f32.gmra.mrb[0].mxu0 %v432
      %v539 = vpop.f32.mrb[0].mxu0
      %v540 = vadd.f32 0.0, %v539
      %v541 = vpop.f32.mrb[0].mxu0
      %542 = vmatprep.mubr.f32.mxu0 0.0
      %543 = vmatmul.mubr.f32.gmra.mrb[0].mxu0 %v434
      %v544 = vpop.f32.mrb[0].mxu0
      %v545 = vadd.f32 0.0, %v544
      %v546 = vpop.f32.mrb[0].mxu0
      %547 = vmatprep.mubr.f32.mxu0 0.0
      %548 = vmatmul.mubr.f32.gmra.mrb[0].mxu0 %v436
      %v549 = vpop.f32.mrb[0].mxu0
      %v550 = vadd.f32 0.0, %v549
      %v551 = vpop.f32.mrb[0].mxu0
      %552 = vmatprep.mubr.f32.mxu0 0.0
      %553 = vmatmul.mubr.f32.gmra.mrb[0].mxu0 %v438
      %v554 = vpop.f32.mrb[0].mxu0
      %v555 = vadd.f32 0.0, %v554
      %v556 = vpop.f32.mrb[0].mxu0
      %557 = vmatprep.mubr.f32.mxu0 0.0
      %558 = vmatmul.mubr.f32.gmra.mrb[0].mxu0 %v440
      %v559 = vpop.f32.mrb[0].mxu0
      %v560 = vadd.f32 0.0, %v559
      %v561 = vpop.f32.mrb[0].mxu0
      %562 = vdwg.mxu0
      %v563 = vld [vmem:[#allocation2] sm:$0xff]
      %v564 = vld [vmem:[#allocation2 + $0x8] sm:$0xff]
      %v565 = vld [vmem:[#allocation2 + $0x10] sm:$0xff]
      %v566 = vld [vmem:[#allocation2 + $0x18] sm:$0xff]
      %v567 = vld [vmem:[#allocation2 + $0x20] sm:$0xff]
      %v568 = vld [vmem:[#allocation2 + $0x28] sm:$0xff]
      %v569 = vld [vmem:[#allocation2 + $0x30] sm:$0xff]
      %v570 = vld [vmem:[#allocation2 + $0x38] sm:$0xff]
      %v571 = vadd.f32 %v563, %v525
      %v572 = vadd.f32 %v564, %v530
      %v573 = vadd.f32 %v565, %v535
      %v574 = vadd.f32 %v566, %v540
      %v575 = vadd.f32 %v567, %v545
      %v576 = vadd.f32 %v568, %v550
      %v577 = vadd.f32 %v569, %v555
      %v578 = vadd.f32 %v570, %v560
      %579 = vst [vmem:[#allocation2] sm:$0xff] %v571
      %580 = vst [vmem:[#allocation2 + $0x8] sm:$0xff] %v572
      %581 = vst [vmem:[#allocation2 + $0x10] sm:$0xff] %v573
      %582 = vst [vmem:[#allocation2 + $0x18] sm:$0xff] %v574
      %583 = vst [vmem:[#allocation2 + $0x20] sm:$0xff] %v575
      %584 = vst [vmem:[#allocation2 + $0x28] sm:$0xff] %v576
      %585 = vst [vmem:[#allocation2 + $0x30] sm:$0xff] %v577
      %586 = vst [vmem:[#allocation2 + $0x38] sm:$0xff] %v578
      %s587 = scalar_lea.vmem %s259, 2
      %v588 = vld [vmem:[%s587] ss:$2 sm:$0xff]
      %s589 = scalar_lea.vmem %s259, 26
      %v590 = vld [vmem:[%s589] ss:$2 sm:$0xff]
      %s591 = scalar_lea.vmem %s259, 50
      %v592 = vld [vmem:[%s591] ss:$2 sm:$0xff]
      %s593 = scalar_lea.vmem %s259, 74
      %v594 = vld [vmem:[%s593] ss:$2 sm:$0xff]
      %s595 = scalar_lea.vmem %s259, 98
      %v596 = vld [vmem:[%s595] ss:$2 sm:$0xff]
      %s597 = scalar_lea.vmem %s259, 122
      %v598 = vld [vmem:[%s597] ss:$2 sm:$0xff]
      %s599 = scalar_lea.vmem %s259, 146
      %v600 = vld [vmem:[%s599] ss:$2 sm:$0xff]
      %s601 = scalar_lea.vmem %s259, 170
      %v602 = vld [vmem:[%s601] ss:$2 sm:$0xff]
      %s603 = scalar_lea.vmem %s3, 256
      %v604 = vld [vmem:[%s603] sm:$0xff]
      %v605 = vld [vmem:[%s603 + $0x8] sm:$0xff]
      %v606 = vld [vmem:[%s603 + $0x10] sm:$0xff]
      %v607 = vld [vmem:[%s603 + $0x18] sm:$0xff]
      %v608 = vld [vmem:[%s603 + $0x20] sm:$0xff]
      %v609 = vld [vmem:[%s603 + $0x28] sm:$0xff]
      %v610 = vld [vmem:[%s603 + $0x30] sm:$0xff]
      %v611 = vld [vmem:[%s603 + $0x38] sm:$0xff]
      %v612 = vld [vmem:[%s603 + $0x40] sm:$0xff]
      %v613 = vld [vmem:[%s603 + $0x48] sm:$0xff]
      %v614 = vld [vmem:[%s603 + $0x50] sm:$0xff]
      %v615 = vld [vmem:[%s603 + $0x58] sm:$0xff]
      %v616 = vld [vmem:[%s603 + $0x60] sm:$0xff]
      %v617 = vld [vmem:[%s603 + $0x68] sm:$0xff]
      %v618 = vld [vmem:[%s603 + $0x70] sm:$0xff]
      %v619 = vld [vmem:[%s603 + $0x78] sm:$0xff]
      %620 = vmatprep.subr.mxu0 0.0
      %621 = vmatpush1.msra.mxu0 %v604
      %622 = vmatprep.subr.mxu0 0.0
      %623 = vmatpush1.msra.mxu0 %v605
      %624 = vmatprep.subr.mxu0 0.0
      %625 = vmatpush1.msra.mxu0 %v606
      %626 = vmatprep.subr.mxu0 0.0
      %627 = vmatpush1.msra.mxu0 %v607
      %628 = vmatprep.subr.mxu0 0.0
      %629 = vmatpush1.msra.mxu0 %v608
      %630 = vmatprep.subr.mxu0 0.0
      %631 = vmatpush1.msra.mxu0 %v609
      %632 = vmatprep.subr.mxu0 0.0
      %633 = vmatpush1.msra.mxu0 %v610
      %634 = vmatprep.subr.mxu0 0.0
      %635 = vmatpush1.msra.mxu0 %v611
      %636 = vmatprep.subr.mxu0 0.0
      %637 = vmatpush1.msra.mxu0 %v612
      %638 = vmatprep.subr.mxu0 0.0
      %639 = vmatpush1.msra.mxu0 %v613
      %640 = vmatprep.subr.mxu0 0.0
      %641 = vmatpush1.msra.mxu0 %v614
      %642 = vmatprep.subr.mxu0 0.0
      %643 = vmatpush1.msra.mxu0 %v615
      %644 = vmatprep.subr.mxu0 0.0
      %645 = vmatpush1.msra.mxu0 %v616
      %646 = vmatprep.subr.mxu0 0.0
      %647 = vmatpush1.msra.mxu0 %v617
      %648 = vmatprep.subr.mxu0 0.0
      %649 = vmatpush1.msra.mxu0 %v618
      %650 = vmatprep.subr.mxu0 0.0
      %651 = vmatpush1.msra.mxu0 %v619
      %652 = vmatprep.subr.mxu0 0.0
      %653 = vmatpush1.msra.mxu0 0.0
      %654 = vmatprep.subr.mxu0 0.0
      %655 = vmatpush1.msra.mxu0 0.0
      %656 = vmatprep.subr.mxu0 0.0
      %657 = vmatpush1.msra.mxu0 0.0
      %658 = vmatprep.subr.mxu0 0.0
      %659 = vmatpush1.msra.mxu0 0.0
      %660 = vmatprep.subr.mxu0 0.0
      %661 = vmatpush1.msra.mxu0 0.0
      %662 = vmatprep.subr.mxu0 0.0
      %663 = vmatpush1.msra.mxu0 0.0
      %664 = vmatprep.subr.mxu0 0.0
      %665 = vmatpush1.msra.mxu0 0.0
      %666 = vmatprep.subr.mxu0 0.0
      %667 = vmatpush1.msra.mxu0 0.0
      %668 = vmatprep.subr.mxu0 0.0
      %669 = vmatpush1.msra.mxu0 0.0
      %670 = vmatprep.subr.mxu0 0.0
      %671 = vmatpush1.msra.mxu0 0.0
      %672 = vmatprep.subr.mxu0 0.0
      %673 = vmatpush1.msra.mxu0 0.0
      %674 = vmatprep.subr.mxu0 0.0
      %675 = vmatpush1.msra.mxu0 0.0
      %676 = vmatprep.subr.mxu0 0.0
      %677 = vmatpush1.msra.mxu0 0.0
      %678 = vmatprep.subr.mxu0 0.0
      %679 = vmatpush1.msra.mxu0 0.0
      %680 = vmatprep.subr.mxu0 0.0
      %681 = vmatpush1.msra.mxu0 0.0
      %682 = vmatprep.subr.mxu0 0.0
      %683 = vmatpush1.msra.mxu0 0.0
      %684 = vmatprep.mubr.f32.mxu0 0.0
      %685 = vmatmul.mubr.f32.gmra.mrb[0].mxu0 %v588
      %v686 = vpop.f32.mrb[0].mxu0
      %v687 = vadd.f32 0.0, %v686
      %v688 = vpop.f32.mrb[0].mxu0
      %689 = vmatprep.mubr.f32.mxu0 0.0
      %690 = vmatmul.mubr.f32.gmra.mrb[0].mxu0 %v590
      %v691 = vpop.f32.mrb[0].mxu0
      %v692 = vadd.f32 0.0, %v691
      %v693 = vpop.f32.mrb[0].mxu0
      %694 = vmatprep.mubr.f32.mxu0 0.0
      %695 = vmatmul.mubr.f32.gmra.mrb[0].mxu0 %v592
      %v696 = vpop.f32.mrb[0].mxu0
      %v697 = vadd.f32 0.0, %v696
      %v698 = vpop.f32.mrb[0].mxu0
      %699 = vmatprep.mubr.f32.mxu0 0.0
      %700 = vmatmul.mubr.f32.gmra.mrb[0].mxu0 %v594
      %v701 = vpop.f32.mrb[0].mxu0
      %v702 = vadd.f32 0.0, %v701
      %v703 = vpop.f32.mrb[0].mxu0
      %704 = vmatprep.mubr.f32.mxu0 0.0
      %705 = vmatmul.mubr.f32.gmra.mrb[0].mxu0 %v596
      %v706 = vpop.f32.mrb[0].mxu0
      %v707 = vadd.f32 0.0, %v706
      %v708 = vpop.f32.mrb[0].mxu0
      %709 = vmatprep.mubr.f32.mxu0 0.0
      %710 = vmatmul.mubr.f32.gmra.mrb[0].mxu0 %v598
      %v711 = vpop.f32.mrb[0].mxu0
      %v712 = vadd.f32 0.0, %v711
      %v713 = vpop.f32.mrb[0].mxu0
      %714 = vmatprep.mubr.f32.mxu0 0.0
      %715 = vmatmul.mubr.f32.gmra.mrb[0].mxu0 %v600
      %v716 = vpop.f32.mrb[0].mxu0
      %v717 = vadd.f32 0.0, %v716
      %v718 = vpop.f32.mrb[0].mxu0
      %719 = vmatprep.mubr.f32.mxu0 0.0
      %720 = vmatmul.mubr.f32.gmra.mrb[0].mxu0 %v602
      %v721 = vpop.f32.mrb[0].mxu0
      %v722 = vadd.f32 0.0, %v721
      %v723 = vpop.f32.mrb[0].mxu0
      %724 = vdwg.mxu0
      %v725 = vld [vmem:[#allocation2] sm:$0xff]
      %v726 = vld [vmem:[#allocation2 + $0x8] sm:$0xff]
      %v727 = vld [vmem:[#allocation2 + $0x10] sm:$0xff]
      %v728 = vld [vmem:[#allocation2 + $0x18] sm:$0xff]
      %v729 = vld [vmem:[#allocation2 + $0x20] sm:$0xff]
      %v730 = vld [vmem:[#allocation2 + $0x28] sm:$0xff]
      %v731 = vld [vmem:[#allocation2 + $0x30] sm:$0xff]
      %v732 = vld [vmem:[#allocation2 + $0x38] sm:$0xff]
      %v733 = vadd.f32 %v725, %v687
      %v734 = vadd.f32 %v726, %v692
      %v735 = vadd.f32 %v727, %v697
      %v736 = vadd.f32 %v728, %v702
      %v737 = vadd.f32 %v729, %v707
      %v738 = vadd.f32 %v730, %v712
      %v739 = vadd.f32 %v731, %v717
      %v740 = vadd.f32 %v732, %v722
      %741 = vst [vmem:[#allocation2] sm:$0xff] %v733
      %742 = vst [vmem:[#allocation2 + $0x8] sm:$0xff] %v734
      %743 = vst [vmem:[#allocation2 + $0x10] sm:$0xff] %v735
      %744 = vst [vmem:[#allocation2 + $0x18] sm:$0xff] %v736
      %745 = vst [vmem:[#allocation2 + $0x20] sm:$0xff] %v737
      %746 = vst [vmem:[#allocation2 + $0x28] sm:$0xff] %v738
      %747 = vst [vmem:[#allocation2 + $0x30] sm:$0xff] %v739
      %748 = vst [vmem:[#allocation2 + $0x38] sm:$0xff] %v740
      %v749 = vld [vmem:[%s266] ss:$2 sm:$0xff]
      %s750 = scalar_lea.vmem %s266, 24
      %v751 = vld [vmem:[%s750] ss:$2 sm:$0xff]
      %s752 = scalar_lea.vmem %s266, 48
      %v753 = vld [vmem:[%s752] ss:$2 sm:$0xff]
      %s754 = scalar_lea.vmem %s266, 72
      %v755 = vld [vmem:[%s754] ss:$2 sm:$0xff]
      %s756 = scalar_lea.vmem %s266, 96
      %v757 = vld [vmem:[%s756] ss:$2 sm:$0xff]
      %s758 = scalar_lea.vmem %s266, 120
      %v759 = vld [vmem:[%s758] ss:$2 sm:$0xff]
      %s760 = scalar_lea.vmem %s266, 144
      %v761 = vld [vmem:[%s760] ss:$2 sm:$0xff]
      %s762 = scalar_lea.vmem %s266, 168
      %v763 = vld [vmem:[%s762] ss:$2 sm:$0xff]
      %s764 = scalar_lea.vmem %s3, 384
      %v765 = vld [vmem:[%s764] sm:$0xff]
      %v766 = vld [vmem:[%s764 + $0x8] sm:$0xff]
      %v767 = vld [vmem:[%s764 + $0x10] sm:$0xff]
      %v768 = vld [vmem:[%s764 + $0x18] sm:$0xff]
      %v769 = vld [vmem:[%s764 + $0x20] sm:$0xff]
      %v770 = vld [vmem:[%s764 + $0x28] sm:$0xff]
      %v771 = vld [vmem:[%s764 + $0x30] sm:$0xff]
      %v772 = vld [vmem:[%s764 + $0x38] sm:$0xff]
      %v773 = vld [vmem:[%s764 + $0x40] sm:$0xff]
      %v774 = vld [vmem:[%s764 + $0x48] sm:$0xff]
      %v775 = vld [vmem:[%s764 + $0x50] sm:$0xff]
      %v776 = vld [vmem:[%s764 + $0x58] sm:$0xff]
      %v777 = vld [vmem:[%s764 + $0x60] sm:$0xff]
      %v778 = vld [vmem:[%s764 + $0x68] sm:$0xff]
      %v779 = vld [vmem:[%s764 + $0x70] sm:$0xff]
      %v780 = vld [vmem:[%s764 + $0x78] sm:$0xff]
      %781 = vmatprep.subr.mxu0 0.0
      %782 = vmatpush1.msra.mxu0 %v765
      %783 = vmatprep.subr.mxu0 0.0
      %784 = vmatpush1.msra.mxu0 %v766
      %785 = vmatprep.subr.mxu0 0.0
      %786 = vmatpush1.msra.mxu0 %v767
      %787 = vmatprep.subr.mxu0 0.0
      %788 = vmatpush1.msra.mxu0 %v768
      %789 = vmatprep.subr.mxu0 0.0
      %790 = vmatpush1.msra.mxu0 %v769
      %791 = vmatprep.subr.mxu0 0.0
      %792 = vmatpush1.msra.mxu0 %v770
      %793 = vmatprep.subr.mxu0 0.0
      %794 = vmatpush1.msra.mxu0 %v771
      %795 = vmatprep.subr.mxu0 0.0
      %796 = vmatpush1.msra.mxu0 %v772
      %797 = vmatprep.subr.mxu0 0.0
      %798 = vmatpush1.msra.mxu0 %v773
      %799 = vmatprep.subr.mxu0 0.0
      %800 = vmatpush1.msra.mxu0 %v774
      %801 = vmatprep.subr.mxu0 0.0
      %802 = vmatpush1.msra.mxu0 %v775
      %803 = vmatprep.subr.mxu0 0.0
      %804 = vmatpush1.msra.mxu0 %v776
      %805 = vmatprep.subr.mxu0 0.0
      %806 = vmatpush1.msra.mxu0 %v777
      %807 = vmatprep.subr.mxu0 0.0
      %808 = vmatpush1.msra.mxu0 %v778
      %809 = vmatprep.subr.mxu0 0.0
      %810 = vmatpush1.msra.mxu0 %v779
      %811 = vmatprep.subr.mxu0 0.0
      %812 = vmatpush1.msra.mxu0 %v780
      %813 = vmatprep.subr.mxu0 0.0
      %814 = vmatpush1.msra.mxu0 0.0
      %815 = vmatprep.subr.mxu0 0.0
      %816 = vmatpush1.msra.mxu0 0.0
      %817 = vmatprep.subr.mxu0 0.0
      %818 = vmatpush1.msra.mxu0 0.0
      %819 = vmatprep.subr.mxu0 0.0
      %820 = vmatpush1.msra.mxu0 0.0
      %821 = vmatprep.subr.mxu0 0.0
      %822 = vmatpush1.msra.mxu0 0.0
      %823 = vmatprep.subr.mxu0 0.0
      %824 = vmatpush1.msra.mxu0 0.0
      %825 = vmatprep.subr.mxu0 0.0
      %826 = vmatpush1.msra.mxu0 0.0
      %827 = vmatprep.subr.mxu0 0.0
      %828 = vmatpush1.msra.mxu0 0.0
      %829 = vmatprep.subr.mxu0 0.0
      %830 = vmatpush1.msra.mxu0 0.0
      %831 = vmatprep.subr.mxu0 0.0
      %832 = vmatpush1.msra.mxu0 0.0
      %833 = vmatprep.subr.mxu0 0.0
      %834 = vmatpush1.msra.mxu0 0.0
      %835 = vmatprep.subr.mxu0 0.0
      %836 = vmatpush1.msra.mxu0 0.0
      %837 = vmatprep.subr.mxu0 0.0
      %838 = vmatpush1.msra.mxu0 0.0
      %839 = vmatprep.subr.mxu0 0.0
      %840 = vmatpush1.msra.mxu0 0.0
      %841 = vmatprep.subr.mxu0 0.0
      %842 = vmatpush1.msra.mxu0 0.0
      %843 = vmatprep.subr.mxu0 0.0
      %844 = vmatpush1.msra.mxu0 0.0
      %845 = vmatprep.mubr.f32.mxu0 0.0
      %846 = vmatmul.mubr.f32.gmra.mrb[0].mxu0 %v749
      %v847 = vpop.f32.mrb[0].mxu0
      %v848 = vadd.f32 0.0, %v847
      %v849 = vpop.f32.mrb[0].mxu0
      %850 = vmatprep.mubr.f32.mxu0 0.0
      %851 = vmatmul.mubr.f32.gmra.mrb[0].mxu0 %v751
      %v852 = vpop.f32.mrb[0].mxu0
      %v853 = vadd.f32 0.0, %v852
      %v854 = vpop.f32.mrb[0].mxu0
      %855 = vmatprep.mubr.f32.mxu0 0.0
      %856 = vmatmul.mubr.f32.gmra.mrb[0].mxu0 %v753
      %v857 = vpop.f32.mrb[0].mxu0
      %v858 = vadd.f32 0.0, %v857
      %v859 = vpop.f32.mrb[0].mxu0
      %860 = vmatprep.mubr.f32.mxu0 0.0
      %861 = vmatmul.mubr.f32.gmra.mrb[0].mxu0 %v755
      %v862 = vpop.f32.mrb[0].mxu0
      %v863 = vadd.f32 0.0, %v862
      %v864 = vpop.f32.mrb[0].mxu0
      %865 = vmatprep.mubr.f32.mxu0 0.0
      %866 = vmatmul.mubr.f32.gmra.mrb[0].mxu0 %v757
      %v867 = vpop.f32.mrb[0].mxu0
      %v868 = vadd.f32 0.0, %v867
      %v869 = vpop.f32.mrb[0].mxu0
      %870 = vmatprep.mubr.f32.mxu0 0.0
      %871 = vmatmul.mubr.f32.gmra.mrb[0].mxu0 %v759
      %v872 = vpop.f32.mrb[0].mxu0
      %v873 = vadd.f32 0.0, %v872
      %v874 = vpop.f32.mrb[0].mxu0
      %875 = vmatprep.mubr.f32.mxu0 0.0
      %876 = vmatmul.mubr.f32.gmra.mrb[0].mxu0 %v761
      %v877 = vpop.f32.mrb[0].mxu0
      %v878 = vadd.f32 0.0, %v877
      %v879 = vpop.f32.mrb[0].mxu0
      %880 = vmatprep.mubr.f32.mxu0 0.0
      %881 = vmatmul.mubr.f32.gmra.mrb[0].mxu0 %v763
      %v882 = vpop.f32.mrb[0].mxu0
      %v883 = vadd.f32 0.0, %v882
      %v884 = vpop.f32.mrb[0].mxu0
      %885 = vdwg.mxu0
      %v886 = vld [vmem:[#allocation2] sm:$0xff]
      %v887 = vld [vmem:[#allocation2 + $0x8] sm:$0xff]
      %v888 = vld [vmem:[#allocation2 + $0x10] sm:$0xff]
      %v889 = vld [vmem:[#allocation2 + $0x18] sm:$0xff]
      %v890 = vld [vmem:[#allocation2 + $0x20] sm:$0xff]
      %v891 = vld [vmem:[#allocation2 + $0x28] sm:$0xff]
      %v892 = vld [vmem:[#allocation2 + $0x30] sm:$0xff]
      %v893 = vld [vmem:[#allocation2 + $0x38] sm:$0xff]
      %v894 = vadd.f32 %v886, %v848
      %v895 = vadd.f32 %v887, %v853
      %v896 = vadd.f32 %v888, %v858
      %v897 = vadd.f32 %v889, %v863
      %v898 = vadd.f32 %v890, %v868
      %v899 = vadd.f32 %v891, %v873
      %v900 = vadd.f32 %v892, %v878
      %v901 = vadd.f32 %v893, %v883
      %902 = vst [vmem:[#allocation2] sm:$0xff] %v894
      %903 = vst [vmem:[#allocation2 + $0x8] sm:$0xff] %v895
      %904 = vst [vmem:[#allocation2 + $0x10] sm:$0xff] %v896
      %905 = vst [vmem:[#allocation2 + $0x18] sm:$0xff] %v897
      %906 = vst [vmem:[#allocation2 + $0x20] sm:$0xff] %v898
      %907 = vst [vmem:[#allocation2 + $0x28] sm:$0xff] %v899
      %908 = vst [vmem:[#allocation2 + $0x30] sm:$0xff] %v900
      %909 = vst [vmem:[#allocation2 + $0x38] sm:$0xff] %v901
      %s910 = scalar_lea.vmem %s266, 1
      %v911 = vld [vmem:[%s910] ss:$2 sm:$0xff]
      %s912 = scalar_lea.vmem %s266, 25
      %v913 = vld [vmem:[%s912] ss:$2 sm:$0xff]
      %s914 = scalar_lea.vmem %s266, 49
      %v915 = vld [vmem:[%s914] ss:$2 sm:$0xff]
      %s916 = scalar_lea.vmem %s266, 73
      %v917 = vld [vmem:[%s916] ss:$2 sm:$0xff]
      %s918 = scalar_lea.vmem %s266, 97
      %v919 = vld [vmem:[%s918] ss:$2 sm:$0xff]
      %s920 = scalar_lea.vmem %s266, 121
      %v921 = vld [vmem:[%s920] ss:$2 sm:$0xff]
      %s922 = scalar_lea.vmem %s266, 145
      %v923 = vld [vmem:[%s922] ss:$2 sm:$0xff]
      %s924 = scalar_lea.vmem %s266, 169
      %v925 = vld [vmem:[%s924] ss:$2 sm:$0xff]
      %s926 = scalar_lea.vmem %s3, 512
      %v927 = vld [vmem:[%s926] sm:$0xff]
      %v928 = vld [vmem:[%s926 + $0x8] sm:$0xff]
      %v929 = vld [vmem:[%s926 + $0x10] sm:$0xff]
      %v930 = vld [vmem:[%s926 + $0x18] sm:$0xff]
      %v931 = vld [vmem:[%s926 + $0x20] sm:$0xff]
      %v932 = vld [vmem:[%s926 + $0x28] sm:$0xff]
      %v933 = vld [vmem:[%s926 + $0x30] sm:$0xff]
      %v934 = vld [vmem:[%s926 + $0x38] sm:$0xff]
      %v935 = vld [vmem:[%s926 + $0x40] sm:$0xff]
      %v936 = vld [vmem:[%s926 + $0x48] sm:$0xff]
      %v937 = vld [vmem:[%s926 + $0x50] sm:$0xff]
      %v938 = vld [vmem:[%s926 + $0x58] sm:$0xff]
      %v939 = vld [vmem:[%s926 + $0x60] sm:$0xff]
      %v940 = vld [vmem:[%s926 + $0x68] sm:$0xff]
      %v941 = vld [vmem:[%s926 + $0x70] sm:$0xff]
      %v942 = vld [vmem:[%s926 + $0x78] sm:$0xff]
      %943 = vmatprep.subr.mxu0 0.0
      %944 = vmatpush1.msra.mxu0 %v927
      %945 = vmatprep.subr.mxu0 0.0
      %946 = vmatpush1.msra.mxu0 %v928
      %947 = vmatprep.subr.mxu0 0.0
      %948 = vmatpush1.msra.mxu0 %v929
      %949 = vmatprep.subr.mxu0 0.0
      %950 = vmatpush1.msra.mxu0 %v930
      %951 = vmatprep.subr.mxu0 0.0
      %952 = vmatpush1.msra.mxu0 %v931
      %953 = vmatprep.subr.mxu0 0.0
      %954 = vmatpush1.msra.mxu0 %v932
      %955 = vmatprep.subr.mxu0 0.0
      %956 = vmatpush1.msra.mxu0 %v933
      %957 = vmatprep.subr.mxu0 0.0
      %958 = vmatpush1.msra.mxu0 %v934
      %959 = vmatprep.subr.mxu0 0.0
      %960 = vmatpush1.msra.mxu0 %v935
      %961 = vmatprep.subr.mxu0 0.0
      %962 = vmatpush1.msra.mxu0 %v936
      %963 = vmatprep.subr.mxu0 0.0
      %964 = vmatpush1.msra.mxu0 %v937
      %965 = vmatprep.subr.mxu0 0.0
      %966 = vmatpush1.msra.mxu0 %v938
      %967 = vmatprep.subr.mxu0 0.0
      %968 = vmatpush1.msra.mxu0 %v939
      %969 = vmatprep.subr.mxu0 0.0
      %970 = vmatpush1.msra.mxu0 %v940
      %971 = vmatprep.subr.mxu0 0.0
      %972 = vmatpush1.msra.mxu0 %v941
      %973 = vmatprep.subr.mxu0 0.0
      %974 = vmatpush1.msra.mxu0 %v942
      %975 = vmatprep.subr.mxu0 0.0
      %976 = vmatpush1.msra.mxu0 0.0
      %977 = vmatprep.subr.mxu0 0.0
      %978 = vmatpush1.msra.mxu0 0.0
      %979 = vmatprep.subr.mxu0 0.0
      %980 = vmatpush1.msra.mxu0 0.0
      %981 = vmatprep.subr.mxu0 0.0
      %982 = vmatpush1.msra.mxu0 0.0
      %983 = vmatprep.subr.mxu0 0.0
      %984 = vmatpush1.msra.mxu0 0.0
      %985 = vmatprep.subr.mxu0 0.0
      %986 = vmatpush1.msra.mxu0 0.0
      %987 = vmatprep.subr.mxu0 0.0
      %988 = vmatpush1.msra.mxu0 0.0
      %989 = vmatprep.subr.mxu0 0.0
      %990 = vmatpush1.msra.mxu0 0.0
      %991 = vmatprep.subr.mxu0 0.0
      %992 = vmatpush1.msra.mxu0 0.0
      %993 = vmatprep.subr.mxu0 0.0
      %994 = vmatpush1.msra.mxu0 0.0
      %995 = vmatprep.subr.mxu0 0.0
      %996 = vmatpush1.msra.mxu0 0.0
      %997 = vmatprep.subr.mxu0 0.0
      %998 = vmatpush1.msra.mxu0 0.0
      %999 = vmatprep.subr.mxu0 0.0
      %1000 = vmatpush1.msra.mxu0 0.0
      %1001 = vmatprep.subr.mxu0 0.0
      %1002 = vmatpush1.msra.mxu0 0.0
      %1003 = vmatprep.subr.mxu0 0.0
      %1004 = vmatpush1.msra.mxu0 0.0
      %1005 = vmatprep.subr.mxu0 0.0
      %1006 = vmatpush1.msra.mxu0 0.0
      %1007 = vmatprep.mubr.f32.mxu0 0.0
      %1008 = vmatmul.mubr.f32.gmra.mrb[0].mxu0 %v911
      %v1009 = vpop.f32.mrb[0].mxu0
      %v1010 = vadd.f32 0.0, %v1009
      %v1011 = vpop.f32.mrb[0].mxu0
      %1012 = vmatprep.mubr.f32.mxu0 0.0
      %1013 = vmatmul.mubr.f32.gmra.mrb[0].mxu0 %v913
      %v1014 = vpop.f32.mrb[0].mxu0
      %v1015 = vadd.f32 0.0, %v1014
      %v1016 = vpop.f32.mrb[0].mxu0
      %1017 = vmatprep.mubr.f32.mxu0 0.0
      %1018 = vmatmul.mubr.f32.gmra.mrb[0].mxu0 %v915
      %v1019 = vpop.f32.mrb[0].mxu0
      %v1020 = vadd.f32 0.0, %v1019
      %v1021 = vpop.f32.mrb[0].mxu0
      %1022 = vmatprep.mubr.f32.mxu0 0.0
      %1023 = vmatmul.mubr.f32.gmra.mrb[0].mxu0 %v917
      %v1024 = vpop.f32.mrb[0].mxu0
      %v1025 = vadd.f32 0.0, %v1024
      %v1026 = vpop.f32.mrb[0].mxu0
      %1027 = vmatprep.mubr.f32.mxu0 0.0
      %1028 = vmatmul.mubr.f32.gmra.mrb[0].mxu0 %v919
      %v1029 = vpop.f32.mrb[0].mxu0
      %v1030 = vadd.f32 0.0, %v1029
      %v1031 = vpop.f32.mrb[0].mxu0
      %1032 = vmatprep.mubr.f32.mxu0 0.0
      %1033 = vmatmul.mubr.f32.gmra.mrb[0].mxu0 %v921
      %v1034 = vpop.f32.mrb[0].mxu0
      %v1035 = vadd.f32 0.0, %v1034
      %v1036 = vpop.f32.mrb[0].mxu0
      %1037 = vmatprep.mubr.f32.mxu0 0.0
      %1038 = vmatmul.mubr.f32.gmra.mrb[0].mxu0 %v923
      %v1039 = vpop.f32.mrb[0].mxu0
      %v1040 = vadd.f32 0.0, %v1039
      %v1041 = vpop.f32.mrb[0].mxu0
      %1042 = vmatprep.mubr.f32.mxu0 0.0
      %1043 = vmatmul.mubr.f32.gmra.mrb[0].mxu0 %v925
      %v1044 = vpop.f32.mrb[0].mxu0
      %v1045 = vadd.f32 0.0, %v1044
      %v1046 = vpop.f32.mrb[0].mxu0
      %1047 = vdwg.mxu0
      %v1048 = vld [vmem:[#allocation2] sm:$0xff]
      %v1049 = vld [vmem:[#allocation2 + $0x8] sm:$0xff]
      %v1050 = vld [vmem:[#allocation2 + $0x10] sm:$0xff]
      %v1051 = vld [vmem:[#allocation2 + $0x18] sm:$0xff]
      %v1052 = vld [vmem:[#allocation2 + $0x20] sm:$0xff]
      %v1053 = vld [vmem:[#allocation2 + $0x28] sm:$0xff]
      %v1054 = vld [vmem:[#allocation2 + $0x30] sm:$0xff]
      %v1055 = vld [vmem:[#allocation2 + $0x38] sm:$0xff]
      %v1056 = vadd.f32 %v1048, %v1010
      %v1057 = vadd.f32 %v1049, %v1015
      %v1058 = vadd.f32 %v1050, %v1020
      %v1059 = vadd.f32 %v1051, %v1025
      %v1060 = vadd.f32 %v1052, %v1030
      %v1061 = vadd.f32 %v1053, %v1035
      %v1062 = vadd.f32 %v1054, %v1040
      %v1063 = vadd.f32 %v1055, %v1045
      %1064 = vst [vmem:[#allocation2] sm:$0xff] %v1056
      %1065 = vst [vmem:[#allocation2 + $0x8] sm:$0xff] %v1057
      %1066 = vst [vmem:[#allocation2 + $0x10] sm:$0xff] %v1058
      %1067 = vst [vmem:[#allocation2 + $0x18] sm:$0xff] %v1059
      %1068 = vst [vmem:[#allocation2 + $0x20] sm:$0xff] %v1060
      %1069 = vst [vmem:[#allocation2 + $0x28] sm:$0xff] %v1061
      %1070 = vst [vmem:[#allocation2 + $0x30] sm:$0xff] %v1062
      %1071 = vst [vmem:[#allocation2 + $0x38] sm:$0xff] %v1063
      %s1072 = scalar_lea.vmem %s266, 2
      %v1073 = vld [vmem:[%s1072] ss:$2 sm:$0xff]
      %s1074 = scalar_lea.vmem %s266, 26
      %v1075 = vld [vmem:[%s1074] ss:$2 sm:$0xff]
      %s1076 = scalar_lea.vmem %s266, 50
      %v1077 = vld [vmem:[%s1076] ss:$2 sm:$0xff]
      %s1078 = scalar_lea.vmem %s266, 74
      %v1079 = vld [vmem:[%s1078] ss:$2 sm:$0xff]
      %s1080 = scalar_lea.vmem %s266, 98
      %v1081 = vld [vmem:[%s1080] ss:$2 sm:$0xff]
      %s1082 = scalar_lea.vmem %s266, 122
      %v1083 = vld [vmem:[%s1082] ss:$2 sm:$0xff]
      %s1084 = scalar_lea.vmem %s266, 146
      %v1085 = vld [vmem:[%s1084] ss:$2 sm:$0xff]
      %s1086 = scalar_lea.vmem %s266, 170
      %v1087 = vld [vmem:[%s1086] ss:$2 sm:$0xff]
      %s1088 = scalar_lea.vmem %s3, 640
      %v1089 = vld [vmem:[%s1088] sm:$0xff]
      %v1090 = vld [vmem:[%s1088 + $0x8] sm:$0xff]
      %v1091 = vld [vmem:[%s1088 + $0x10] sm:$0xff]
      %v1092 = vld [vmem:[%s1088 + $0x18] sm:$0xff]
      %v1093 = vld [vmem:[%s1088 + $0x20] sm:$0xff]
      %v1094 = vld [vmem:[%s1088 + $0x28] sm:$0xff]
      %v1095 = vld [vmem:[%s1088 + $0x30] sm:$0xff]
      %v1096 = vld [vmem:[%s1088 + $0x38] sm:$0xff]
      %v1097 = vld [vmem:[%s1088 + $0x40] sm:$0xff]
      %v1098 = vld [vmem:[%s1088 + $0x48] sm:$0xff]
      %v1099 = vld [vmem:[%s1088 + $0x50] sm:$0xff]
      %v1100 = vld [vmem:[%s1088 + $0x58] sm:$0xff]
      %v1101 = vld [vmem:[%s1088 + $0x60] sm:$0xff]
      %v1102 = vld [vmem:[%s1088 + $0x68] sm:$0xff]
      %v1103 = vld [vmem:[%s1088 + $0x70] sm:$0xff]
      %v1104 = vld [vmem:[%s1088 + $0x78] sm:$0xff]
      %1105 = vmatprep.subr.mxu0 0.0
      %1106 = vmatpush1.msra.mxu0 %v1089
      %1107 = vmatprep.subr.mxu0 0.0
      %1108 = vmatpush1.msra.mxu0 %v1090
      %1109 = vmatprep.subr.mxu0 0.0
      %1110 = vmatpush1.msra.mxu0 %v1091
      %1111 = vmatprep.subr.mxu0 0.0
      %1112 = vmatpush1.msra.mxu0 %v1092
      %1113 = vmatprep.subr.mxu0 0.0
      %1114 = vmatpush1.msra.mxu0 %v1093
      %1115 = vmatprep.subr.mxu0 0.0
      %1116 = vmatpush1.msra.mxu0 %v1094
      %1117 = vmatprep.subr.mxu0 0.0
      %1118 = vmatpush1.msra.mxu0 %v1095
      %1119 = vmatprep.subr.mxu0 0.0
      %1120 = vmatpush1.msra.mxu0 %v1096
      %1121 = vmatprep.subr.mxu0 0.0
      %1122 = vmatpush1.msra.mxu0 %v1097
      %1123 = vmatprep.subr.mxu0 0.0
      %1124 = vmatpush1.msra.mxu0 %v1098
      %1125 = vmatprep.subr.mxu0 0.0
      %1126 = vmatpush1.msra.mxu0 %v1099
      %1127 = vmatprep.subr.mxu0 0.0
      %1128 = vmatpush1.msra.mxu0 %v1100
      %1129 = vmatprep.subr.mxu0 0.0
      %1130 = vmatpush1.msra.mxu0 %v1101
      %1131 = vmatprep.subr.mxu0 0.0
      %1132 = vmatpush1.msra.mxu0 %v1102
      %1133 = vmatprep.subr.mxu0 0.0
      %1134 = vmatpush1.msra.mxu0 %v1103
      %1135 = vmatprep.subr.mxu0 0.0
      %1136 = vmatpush1.msra.mxu0 %v1104
      %1137 = vmatprep.subr.mxu0 0.0
      %1138 = vmatpush1.msra.mxu0 0.0
      %1139 = vmatprep.subr.mxu0 0.0
      %1140 = vmatpush1.msra.mxu0 0.0
      %1141 = vmatprep.subr.mxu0 0.0
      %1142 = vmatpush1.msra.mxu0 0.0
      %1143 = vmatprep.subr.mxu0 0.0
      %1144 = vmatpush1.msra.mxu0 0.0
      %1145 = vmatprep.subr.mxu0 0.0
      %1146 = vmatpush1.msra.mxu0 0.0
      %1147 = vmatprep.subr.mxu0 0.0
      %1148 = vmatpush1.msra.mxu0 0.0
      %1149 = vmatprep.subr.mxu0 0.0
      %1150 = vmatpush1.msra.mxu0 0.0
      %1151 = vmatprep.subr.mxu0 0.0
      %1152 = vmatpush1.msra.mxu0 0.0
      %1153 = vmatprep.subr.mxu0 0.0
      %1154 = vmatpush1.msra.mxu0 0.0
      %1155 = vmatprep.subr.mxu0 0.0
      %1156 = vmatpush1.msra.mxu0 0.0
      %1157 = vmatprep.subr.mxu0 0.0
      %1158 = vmatpush1.msra.mxu0 0.0
      %1159 = vmatprep.subr.mxu0 0.0
      %1160 = vmatpush1.msra.mxu0 0.0
      %1161 = vmatprep.subr.mxu0 0.0
      %1162 = vmatpush1.msra.mxu0 0.0
      %1163 = vmatprep.subr.mxu0 0.0
      %1164 = vmatpush1.msra.mxu0 0.0
      %1165 = vmatprep.subr.mxu0 0.0
      %1166 = vmatpush1.msra.mxu0 0.0
      %1167 = vmatprep.subr.mxu0 0.0
      %1168 = vmatpush1.msra.mxu0 0.0
      %1169 = vmatprep.mubr.f32.mxu0 0.0
      %1170 = vmatmul.mubr.f32.gmra.mrb[0].mxu0 %v1073
      %v1171 = vpop.f32.mrb[0].mxu0
      %v1172 = vadd.f32 0.0, %v1171
      %v1173 = vpop.f32.mrb[0].mxu0
      %1174 = vmatprep.mubr.f32.mxu0 0.0
      %1175 = vmatmul.mubr.f32.gmra.mrb[0].mxu0 %v1075
      %v1176 = vpop.f32.mrb[0].mxu0
      %v1177 = vadd.f32 0.0, %v1176
      %v1178 = vpop.f32.mrb[0].mxu0
      %1179 = vmatprep.mubr.f32.mxu0 0.0
      %1180 = vmatmul.mubr.f32.gmra.mrb[0].mxu0 %v1077
      %v1181 = vpop.f32.mrb[0].mxu0
      %v1182 = vadd.f32 0.0, %v1181
      %v1183 = vpop.f32.mrb[0].mxu0
      %1184 = vmatprep.mubr.f32.mxu0 0.0
      %1185 = vmatmul.mubr.f32.gmra.mrb[0].mxu0 %v1079
      %v1186 = vpop.f32.mrb[0].mxu0
      %v1187 = vadd.f32 0.0, %v1186
      %v1188 = vpop.f32.mrb[0].mxu0
      %1189 = vmatprep.mubr.f32.mxu0 0.0
      %1190 = vmatmul.mubr.f32.gmra.mrb[0].mxu0 %v1081
      %v1191 = vpop.f32.mrb[0].mxu0
      %v1192 = vadd.f32 0.0, %v1191
      %v1193 = vpop.f32.mrb[0].mxu0
      %1194 = vmatprep.mubr.f32.mxu0 0.0
      %1195 = vmatmul.mubr.f32.gmra.mrb[0].mxu0 %v1083
      %v1196 = vpop.f32.mrb[0].mxu0
      %v1197 = vadd.f32 0.0, %v1196
      %v1198 = vpop.f32.mrb[0].mxu0
      %1199 = vmatprep.mubr.f32.mxu0 0.0
      %1200 = vmatmul.mubr.f32.gmra.mrb[0].mxu0 %v1085
      %v1201 = vpop.f32.mrb[0].mxu0
      %v1202 = vadd.f32 0.0, %v1201
      %v1203 = vpop.f32.mrb[0].mxu0
      %1204 = vmatprep.mubr.f32.mxu0 0.0
      %1205 = vmatmul.mubr.f32.gmra.mrb[0].mxu0 %v1087
      %v1206 = vpop.f32.mrb[0].mxu0
      %v1207 = vadd.f32 0.0, %v1206
      %v1208 = vpop.f32.mrb[0].mxu0
      %1209 = vdwg.mxu0
      %v1210 = vld [vmem:[#allocation2] sm:$0xff]
      %v1211 = vld [vmem:[#allocation2 + $0x8] sm:$0xff]
      %v1212 = vld [vmem:[#allocation2 + $0x10] sm:$0xff]
      %v1213 = vld [vmem:[#allocation2 + $0x18] sm:$0xff]
      %v1214 = vld [vmem:[#allocation2 + $0x20] sm:$0xff]
      %v1215 = vld [vmem:[#allocation2 + $0x28] sm:$0xff]
      %v1216 = vld [vmem:[#allocation2 + $0x30] sm:$0xff]
      %v1217 = vld [vmem:[#allocation2 + $0x38] sm:$0xff]
      %v1218 = vadd.f32 %v1210, %v1172
      %v1219 = vadd.f32 %v1211, %v1177
      %v1220 = vadd.f32 %v1212, %v1182
      %v1221 = vadd.f32 %v1213, %v1187
      %v1222 = vadd.f32 %v1214, %v1192
      %v1223 = vadd.f32 %v1215, %v1197
      %v1224 = vadd.f32 %v1216, %v1202
      %v1225 = vadd.f32 %v1217, %v1207
      %1226 = vst [vmem:[#allocation2] sm:$0xff] %v1218
      %1227 = vst [vmem:[#allocation2 + $0x8] sm:$0xff] %v1219
      %1228 = vst [vmem:[#allocation2 + $0x10] sm:$0xff] %v1220
      %1229 = vst [vmem:[#allocation2 + $0x18] sm:$0xff] %v1221
      %1230 = vst [vmem:[#allocation2 + $0x20] sm:$0xff] %v1222
      %1231 = vst [vmem:[#allocation2 + $0x28] sm:$0xff] %v1223
      %1232 = vst [vmem:[#allocation2 + $0x30] sm:$0xff] %v1224
      %1233 = vst [vmem:[#allocation2 + $0x38] sm:$0xff] %v1225
      %v1234 = vld [vmem:[%s273] ss:$2 sm:$0xff]
      %s1235 = scalar_lea.vmem %s273, 24
      %v1236 = vld [vmem:[%s1235] ss:$2 sm:$0xff]
      %s1237 = scalar_lea.vmem %s273, 48
      %v1238 = vld [vmem:[%s1237] ss:$2 sm:$0xff]
      %s1239 = scalar_lea.vmem %s273, 72
      %v1240 = vld [vmem:[%s1239] ss:$2 sm:$0xff]
      %s1241 = scalar_lea.vmem %s273, 96
      %v1242 = vld [vmem:[%s1241] ss:$2 sm:$0xff]
      %s1243 = scalar_lea.vmem %s273, 120
      %v1244 = vld [vmem:[%s1243] ss:$2 sm:$0xff]
      %s1245 = scalar_lea.vmem %s273, 144
      %v1246 = vld [vmem:[%s1245] ss:$2 sm:$0xff]
      %s1247 = scalar_lea.vmem %s273, 168
      %v1248 = vld [vmem:[%s1247] ss:$2 sm:$0xff]
      %s1249 = scalar_lea.vmem %s3, 768
      %v1250 = vld [vmem:[%s1249] sm:$0xff]
      %v1251 = vld [vmem:[%s1249 + $0x8] sm:$0xff]
      %v1252 = vld [vmem:[%s1249 + $0x10] sm:$0xff]
      %v1253 = vld [vmem:[%s1249 + $0x18] sm:$0xff]
      %v1254 = vld [vmem:[%s1249 + $0x20] sm:$0xff]
      %v1255 = vld [vmem:[%s1249 + $0x28] sm:$0xff]
      %v1256 = vld [vmem:[%s1249 + $0x30] sm:$0xff]
      %v1257 = vld [vmem:[%s1249 + $0x38] sm:$0xff]
      %v1258 = vld [vmem:[%s1249 + $0x40] sm:$0xff]
      %v1259 = vld [vmem:[%s1249 + $0x48] sm:$0xff]
      %v1260 = vld [vmem:[%s1249 + $0x50] sm:$0xff]
      %v1261 = vld [vmem:[%s1249 + $0x58] sm:$0xff]
      %v1262 = vld [vmem:[%s1249 + $0x60] sm:$0xff]
      %v1263 = vld [vmem:[%s1249 + $0x68] sm:$0xff]
      %v1264 = vld [vmem:[%s1249 + $0x70] sm:$0xff]
      %v1265 = vld [vmem:[%s1249 + $0x78] sm:$0xff]
      %1266 = vmatprep.subr.mxu0 0.0
      %1267 = vmatpush1.msra.mxu0 %v1250
      %1268 = vmatprep.subr.mxu0 0.0
      %1269 = vmatpush1.msra.mxu0 %v1251
      %1270 = vmatprep.subr.mxu0 0.0
      %1271 = vmatpush1.msra.mxu0 %v1252
      %1272 = vmatprep.subr.mxu0 0.0
      %1273 = vmatpush1.msra.mxu0 %v1253
      %1274 = vmatprep.subr.mxu0 0.0
      %1275 = vmatpush1.msra.mxu0 %v1254
      %1276 = vmatprep.subr.mxu0 0.0
      %1277 = vmatpush1.msra.mxu0 %v1255
      %1278 = vmatprep.subr.mxu0 0.0
      %1279 = vmatpush1.msra.mxu0 %v1256
      %1280 = vmatprep.subr.mxu0 0.0
      %1281 = vmatpush1.msra.mxu0 %v1257
      %1282 = vmatprep.subr.mxu0 0.0
      %1283 = vmatpush1.msra.mxu0 %v1258
      %1284 = vmatprep.subr.mxu0 0.0
      %1285 = vmatpush1.msra.mxu0 %v1259
      %1286 = vmatprep.subr.mxu0 0.0
      %1287 = vmatpush1.msra.mxu0 %v1260
      %1288 = vmatprep.subr.mxu0 0.0
      %1289 = vmatpush1.msra.mxu0 %v1261
      %1290 = vmatprep.subr.mxu0 0.0
      %1291 = vmatpush1.msra.mxu0 %v1262
      %1292 = vmatprep.subr.mxu0 0.0
      %1293 = vmatpush1.msra.mxu0 %v1263
      %1294 = vmatprep.subr.mxu0 0.0
      %1295 = vmatpush1.msra.mxu0 %v1264
      %1296 = vmatprep.subr.mxu0 0.0
      %1297 = vmatpush1.msra.mxu0 %v1265
      %1298 = vmatprep.subr.mxu0 0.0
      %1299 = vmatpush1.msra.mxu0 0.0
      %1300 = vmatprep.subr.mxu0 0.0
      %1301 = vmatpush1.msra.mxu0 0.0
      %1302 = vmatprep.subr.mxu0 0.0
      %1303 = vmatpush1.msra.mxu0 0.0
      %1304 = vmatprep.subr.mxu0 0.0
      %1305 = vmatpush1.msra.mxu0 0.0
      %1306 = vmatprep.subr.mxu0 0.0
      %1307 = vmatpush1.msra.mxu0 0.0
      %1308 = vmatprep.subr.mxu0 0.0
      %1309 = vmatpush1.msra.mxu0 0.0
      %1310 = vmatprep.subr.mxu0 0.0
      %1311 = vmatpush1.msra.mxu0 0.0
      %1312 = vmatprep.subr.mxu0 0.0
      %1313 = vmatpush1.msra.mxu0 0.0
      %1314 = vmatprep.subr.mxu0 0.0
      %1315 = vmatpush1.msra.mxu0 0.0
      %1316 = vmatprep.subr.mxu0 0.0
      %1317 = vmatpush1.msra.mxu0 0.0
      %1318 = vmatprep.subr.mxu0 0.0
      %1319 = vmatpush1.msra.mxu0 0.0
      %1320 = vmatprep.subr.mxu0 0.0
      %1321 = vmatpush1.msra.mxu0 0.0
      %1322 = vmatprep.subr.mxu0 0.0
      %1323 = vmatpush1.msra.mxu0 0.0
      %1324 = vmatprep.subr.mxu0 0.0
      %1325 = vmatpush1.msra.mxu0 0.0
      %1326 = vmatprep.subr.mxu0 0.0
      %1327 = vmatpush1.msra.mxu0 0.0
      %1328 = vmatprep.subr.mxu0 0.0
      %1329 = vmatpush1.msra.mxu0 0.0
      %1330 = vmatprep.mubr.f32.mxu0 0.0
      %1331 = vmatmul.mubr.f32.gmra.mrb[0].mxu0 %v1234
      %v1332 = vpop.f32.mrb[0].mxu0
      %v1333 = vadd.f32 0.0, %v1332
      %v1334 = vpop.f32.mrb[0].mxu0
      %1335 = vmatprep.mubr.f32.mxu0 0.0
      %1336 = vmatmul.mubr.f32.gmra.mrb[0].mxu0 %v1236
      %v1337 = vpop.f32.mrb[0].mxu0
      %v1338 = vadd.f32 0.0, %v1337
      %v1339 = vpop.f32.mrb[0].mxu0
      %1340 = vmatprep.mubr.f32.mxu0 0.0
      %1341 = vmatmul.mubr.f32.gmra.mrb[0].mxu0 %v1238
      %v1342 = vpop.f32.mrb[0].mxu0
      %v1343 = vadd.f32 0.0, %v1342
      %v1344 = vpop.f32.mrb[0].mxu0
      %1345 = vmatprep.mubr.f32.mxu0 0.0
      %1346 = vmatmul.mubr.f32.gmra.mrb[0].mxu0 %v1240
      %v1347 = vpop.f32.mrb[0].mxu0
      %v1348 = vadd.f32 0.0, %v1347
      %v1349 = vpop.f32.mrb[0].mxu0
      %1350 = vmatprep.mubr.f32.mxu0 0.0
      %1351 = vmatmul.mubr.f32.gmra.mrb[0].mxu0 %v1242
      %v1352 = vpop.f32.mrb[0].mxu0
      %v1353 = vadd.f32 0.0, %v1352
      %v1354 = vpop.f32.mrb[0].mxu0
      %1355 = vmatprep.mubr.f32.mxu0 0.0
      %1356 = vmatmul.mubr.f32.gmra.mrb[0].mxu0 %v1244
      %v1357 = vpop.f32.mrb[0].mxu0
      %v1358 = vadd.f32 0.0, %v1357
      %v1359 = vpop.f32.mrb[0].mxu0
      %1360 = vmatprep.mubr.f32.mxu0 0.0
      %1361 = vmatmul.mubr.f32.gmra.mrb[0].mxu0 %v1246
      %v1362 = vpop.f32.mrb[0].mxu0
      %v1363 = vadd.f32 0.0, %v1362
      %v1364 = vpop.f32.mrb[0].mxu0
      %1365 = vmatprep.mubr.f32.mxu0 0.0
      %1366 = vmatmul.mubr.f32.gmra.mrb[0].mxu0 %v1248
      %v1367 = vpop.f32.mrb[0].mxu0
      %v1368 = vadd.f32 0.0, %v1367
      %v1369 = vpop.f32.mrb[0].mxu0
      %1370 = vdwg.mxu0
      %v1371 = vld [vmem:[#allocation2] sm:$0xff]
      %v1372 = vld [vmem:[#allocation2 + $0x8] sm:$0xff]
      %v1373 = vld [vmem:[#allocation2 + $0x10] sm:$0xff]
      %v1374 = vld [vmem:[#allocation2 + $0x18] sm:$0xff]
      %v1375 = vld [vmem:[#allocation2 + $0x20] sm:$0xff]
      %v1376 = vld [vmem:[#allocation2 + $0x28] sm:$0xff]
      %v1377 = vld [vmem:[#allocation2 + $0x30] sm:$0xff]
      %v1378 = vld [vmem:[#allocation2 + $0x38] sm:$0xff]
      %v1379 = vadd.f32 %v1371, %v1333
      %v1380 = vadd.f32 %v1372, %v1338
      %v1381 = vadd.f32 %v1373, %v1343
      %v1382 = vadd.f32 %v1374, %v1348
      %v1383 = vadd.f32 %v1375, %v1353
      %v1384 = vadd.f32 %v1376, %v1358
      %v1385 = vadd.f32 %v1377, %v1363
      %v1386 = vadd.f32 %v1378, %v1368
      %1387 = vst [vmem:[#allocation2] sm:$0xff] %v1379
      %1388 = vst [vmem:[#allocation2 + $0x8] sm:$0xff] %v1380
      %1389 = vst [vmem:[#allocation2 + $0x10] sm:$0xff] %v1381
      %1390 = vst [vmem:[#allocation2 + $0x18] sm:$0xff] %v1382
      %1391 = vst [vmem:[#allocation2 + $0x20] sm:$0xff] %v1383
      %1392 = vst [vmem:[#allocation2 + $0x28] sm:$0xff] %v1384
      %1393 = vst [vmem:[#allocation2 + $0x30] sm:$0xff] %v1385
      %1394 = vst [vmem:[#allocation2 + $0x38] sm:$0xff] %v1386
      %s1395 = scalar_lea.vmem %s273, 1
      %v1396 = vld [vmem:[%s1395] ss:$2 sm:$0xff]
      %s1397 = scalar_lea.vmem %s273, 25
      %v1398 = vld [vmem:[%s1397] ss:$2 sm:$0xff]
      %s1399 = scalar_lea.vmem %s273, 49
      %v1400 = vld [vmem:[%s1399] ss:$2 sm:$0xff]
      %s1401 = scalar_lea.vmem %s273, 73
      %v1402 = vld [vmem:[%s1401] ss:$2 sm:$0xff]
      %s1403 = scalar_lea.vmem %s273, 97
      %v1404 = vld [vmem:[%s1403] ss:$2 sm:$0xff]
      %s1405 = scalar_lea.vmem %s273, 121
      %v1406 = vld [vmem:[%s1405] ss:$2 sm:$0xff]
      %s1407 = scalar_lea.vmem %s273, 145
      %v1408 = vld [vmem:[%s1407] ss:$2 sm:$0xff]
      %s1409 = scalar_lea.vmem %s273, 169
      %v1410 = vld [vmem:[%s1409] ss:$2 sm:$0xff]
      %s1411 = scalar_lea.vmem %s3, 896
      %v1412 = vld [vmem:[%s1411] sm:$0xff]
      %v1413 = vld [vmem:[%s1411 + $0x8] sm:$0xff]
      %v1414 = vld [vmem:[%s1411 + $0x10] sm:$0xff]
      %v1415 = vld [vmem:[%s1411 + $0x18] sm:$0xff]
      %v1416 = vld [vmem:[%s1411 + $0x20] sm:$0xff]
      %v1417 = vld [vmem:[%s1411 + $0x28] sm:$0xff]
      %v1418 = vld [vmem:[%s1411 + $0x30] sm:$0xff]
      %v1419 = vld [vmem:[%s1411 + $0x38] sm:$0xff]
      %v1420 = vld [vmem:[%s1411 + $0x40] sm:$0xff]
      %v1421 = vld [vmem:[%s1411 + $0x48] sm:$0xff]
      %v1422 = vld [vmem:[%s1411 + $0x50] sm:$0xff]
      %v1423 = vld [vmem:[%s1411 + $0x58] sm:$0xff]
      %v1424 = vld [vmem:[%s1411 + $0x60] sm:$0xff]
      %v1425 = vld [vmem:[%s1411 + $0x68] sm:$0xff]
      %v1426 = vld [vmem:[%s1411 + $0x70] sm:$0xff]
      %v1427 = vld [vmem:[%s1411 + $0x78] sm:$0xff]
      %1428 = vmatprep.subr.mxu0 0.0
      %1429 = vmatpush1.msra.mxu0 %v1412
      %1430 = vmatprep.subr.mxu0 0.0
      %1431 = vmatpush1.msra.mxu0 %v1413
      %1432 = vmatprep.subr.mxu0 0.0
      %1433 = vmatpush1.msra.mxu0 %v1414
      %1434 = vmatprep.subr.mxu0 0.0
      %1435 = vmatpush1.msra.mxu0 %v1415
      %1436 = vmatprep.subr.mxu0 0.0
      %1437 = vmatpush1.msra.mxu0 %v1416
      %1438 = vmatprep.subr.mxu0 0.0
      %1439 = vmatpush1.msra.mxu0 %v1417
      %1440 = vmatprep.subr.mxu0 0.0
      %1441 = vmatpush1.msra.mxu0 %v1418
      %1442 = vmatprep.subr.mxu0 0.0
      %1443 = vmatpush1.msra.mxu0 %v1419
      %1444 = vmatprep.subr.mxu0 0.0
      %1445 = vmatpush1.msra.mxu0 %v1420
      %1446 = vmatprep.subr.mxu0 0.0
      %1447 = vmatpush1.msra.mxu0 %v1421
      %1448 = vmatprep.subr.mxu0 0.0
      %1449 = vmatpush1.msra.mxu0 %v1422
      %1450 = vmatprep.subr.mxu0 0.0
      %1451 = vmatpush1.msra.mxu0 %v1423
      %1452 = vmatprep.subr.mxu0 0.0
      %1453 = vmatpush1.msra.mxu0 %v1424
      %1454 = vmatprep.subr.mxu0 0.0
      %1455 = vmatpush1.msra.mxu0 %v1425
      %1456 = vmatprep.subr.mxu0 0.0
      %1457 = vmatpush1.msra.mxu0 %v1426
      %1458 = vmatprep.subr.mxu0 0.0
      %1459 = vmatpush1.msra.mxu0 %v1427
      %1460 = vmatprep.subr.mxu0 0.0
      %1461 = vmatpush1.msra.mxu0 0.0
      %1462 = vmatprep.subr.mxu0 0.0
      %1463 = vmatpush1.msra.mxu0 0.0
      %1464 = vmatprep.subr.mxu0 0.0
      %1465 = vmatpush1.msra.mxu0 0.0
      %1466 = vmatprep.subr.mxu0 0.0
      %1467 = vmatpush1.msra.mxu0 0.0
      %1468 = vmatprep.subr.mxu0 0.0
      %1469 = vmatpush1.msra.mxu0 0.0
      %1470 = vmatprep.subr.mxu0 0.0
      %1471 = vmatpush1.msra.mxu0 0.0
      %1472 = vmatprep.subr.mxu0 0.0
      %1473 = vmatpush1.msra.mxu0 0.0
      %1474 = vmatprep.subr.mxu0 0.0
      %1475 = vmatpush1.msra.mxu0 0.0
      %1476 = vmatprep.subr.mxu0 0.0
      %1477 = vmatpush1.msra.mxu0 0.0
      %1478 = vmatprep.subr.mxu0 0.0
      %1479 = vmatpush1.msra.mxu0 0.0
      %1480 = vmatprep.subr.mxu0 0.0
      %1481 = vmatpush1.msra.mxu0 0.0
      %1482 = vmatprep.subr.mxu0 0.0
      %1483 = vmatpush1.msra.mxu0 0.0
      %1484 = vmatprep.subr.mxu0 0.0
      %1485 = vmatpush1.msra.mxu0 0.0
      %1486 = vmatprep.subr.mxu0 0.0
      %1487 = vmatpush1.msra.mxu0 0.0
      %1488 = vmatprep.subr.mxu0 0.0
      %1489 = vmatpush1.msra.mxu0 0.0
      %1490 = vmatprep.subr.mxu0 0.0
      %1491 = vmatpush1.msra.mxu0 0.0
      %1492 = vmatprep.mubr.f32.mxu0 0.0
      %1493 = vmatmul.mubr.f32.gmra.mrb[0].mxu0 %v1396
      %v1494 = vpop.f32.mrb[0].mxu0
      %v1495 = vadd.f32 0.0, %v1494
      %v1496 = vpop.f32.mrb[0].mxu0
      %1497 = vmatprep.mubr.f32.mxu0 0.0
      %1498 = vmatmul.mubr.f32.gmra.mrb[0].mxu0 %v1398
      %v1499 = vpop.f32.mrb[0].mxu0
      %v1500 = vadd.f32 0.0, %v1499
      %v1501 = vpop.f32.mrb[0].mxu0
      %1502 = vmatprep.mubr.f32.mxu0 0.0
      %1503 = vmatmul.mubr.f32.gmra.mrb[0].mxu0 %v1400
      %v1504 = vpop.f32.mrb[0].mxu0
      %v1505 = vadd.f32 0.0, %v1504
      %v1506 = vpop.f32.mrb[0].mxu0
      %1507 = vmatprep.mubr.f32.mxu0 0.0
      %1508 = vmatmul.mubr.f32.gmra.mrb[0].mxu0 %v1402
      %v1509 = vpop.f32.mrb[0].mxu0
      %v1510 = vadd.f32 0.0, %v1509
      %v1511 = vpop.f32.mrb[0].mxu0
      %1512 = vmatprep.mubr.f32.mxu0 0.0
      %1513 = vmatmul.mubr.f32.gmra.mrb[0].mxu0 %v1404
      %v1514 = vpop.f32.mrb[0].mxu0
      %v1515 = vadd.f32 0.0, %v1514
      %v1516 = vpop.f32.mrb[0].mxu0
      %1517 = vmatprep.mubr.f32.mxu0 0.0
      %1518 = vmatmul.mubr.f32.gmra.mrb[0].mxu0 %v1406
      %v1519 = vpop.f32.mrb[0].mxu0
      %v1520 = vadd.f32 0.0, %v1519
      %v1521 = vpop.f32.mrb[0].mxu0
      %1522 = vmatprep.mubr.f32.mxu0 0.0
      %1523 = vmatmul.mubr.f32.gmra.mrb[0].mxu0 %v1408
      %v1524 = vpop.f32.mrb[0].mxu0
      %v1525 = vadd.f32 0.0, %v1524
      %v1526 = vpop.f32.mrb[0].mxu0
      %1527 = vmatprep.mubr.f32.mxu0 0.0
      %1528 = vmatmul.mubr.f32.gmra.mrb[0].mxu0 %v1410
      %v1529 = vpop.f32.mrb[0].mxu0
      %v1530 = vadd.f32 0.0, %v1529
      %v1531 = vpop.f32.mrb[0].mxu0
      %1532 = vdwg.mxu0
      %v1533 = vld [vmem:[#allocation2] sm:$0xff]
      %v1534 = vld [vmem:[#allocation2 + $0x8] sm:$0xff]
      %v1535 = vld [vmem:[#allocation2 + $0x10] sm:$0xff]
      %v1536 = vld [vmem:[#allocation2 + $0x18] sm:$0xff]
      %v1537 = vld [vmem:[#allocation2 + $0x20] sm:$0xff]
      %v1538 = vld [vmem:[#allocation2 + $0x28] sm:$0xff]
      %v1539 = vld [vmem:[#allocation2 + $0x30] sm:$0xff]
      %v1540 = vld [vmem:[#allocation2 + $0x38] sm:$0xff]
      %v1541 = vadd.f32 %v1533, %v1495
      %v1542 = vadd.f32 %v1534, %v1500
      %v1543 = vadd.f32 %v1535, %v1505
      %v1544 = vadd.f32 %v1536, %v1510
      %v1545 = vadd.f32 %v1537, %v1515
      %v1546 = vadd.f32 %v1538, %v1520
      %v1547 = vadd.f32 %v1539, %v1525
      %v1548 = vadd.f32 %v1540, %v1530
      %1549 = vst [vmem:[#allocation2] sm:$0xff] %v1541
      %1550 = vst [vmem:[#allocation2 + $0x8] sm:$0xff] %v1542
      %1551 = vst [vmem:[#allocation2 + $0x10] sm:$0xff] %v1543
      %1552 = vst [vmem:[#allocation2 + $0x18] sm:$0xff] %v1544
      %1553 = vst [vmem:[#allocation2 + $0x20] sm:$0xff] %v1545
      %1554 = vst [vmem:[#allocation2 + $0x28] sm:$0xff] %v1546
      %1555 = vst [vmem:[#allocation2 + $0x30] sm:$0xff] %v1547
      %1556 = vst [vmem:[#allocation2 + $0x38] sm:$0xff] %v1548
      %s1557 = scalar_lea.vmem %s273, 2
      %v1558 = vld [vmem:[%s1557] ss:$2 sm:$0xff]
      %s1559 = scalar_lea.vmem %s273, 26
      %v1560 = vld [vmem:[%s1559] ss:$2 sm:$0xff]
      %s1561 = scalar_lea.vmem %s273, 50
      %v1562 = vld [vmem:[%s1561] ss:$2 sm:$0xff]
      %s1563 = scalar_lea.vmem %s273, 74
      %v1564 = vld [vmem:[%s1563] ss:$2 sm:$0xff]
      %s1565 = scalar_lea.vmem %s273, 98
      %v1566 = vld [vmem:[%s1565] ss:$2 sm:$0xff]
      %s1567 = scalar_lea.vmem %s273, 122
      %v1568 = vld [vmem:[%s1567] ss:$2 sm:$0xff]
      %s1569 = scalar_lea.vmem %s273, 146
      %v1570 = vld [vmem:[%s1569] ss:$2 sm:$0xff]
      %s1571 = scalar_lea.vmem %s273, 170
      %v1572 = vld [vmem:[%s1571] ss:$2 sm:$0xff]
      %s1573 = scalar_lea.vmem %s3, 1024
      %v1574 = vld [vmem:[%s1573] sm:$0xff]
      %v1575 = vld [vmem:[%s1573 + $0x8] sm:$0xff]
      %v1576 = vld [vmem:[%s1573 + $0x10] sm:$0xff]
      %v1577 = vld [vmem:[%s1573 + $0x18] sm:$0xff]
      %v1578 = vld [vmem:[%s1573 + $0x20] sm:$0xff]
      %v1579 = vld [vmem:[%s1573 + $0x28] sm:$0xff]
      %v1580 = vld [vmem:[%s1573 + $0x30] sm:$0xff]
      %v1581 = vld [vmem:[%s1573 + $0x38] sm:$0xff]
      %v1582 = vld [vmem:[%s1573 + $0x40] sm:$0xff]
      %v1583 = vld [vmem:[%s1573 + $0x48] sm:$0xff]
      %v1584 = vld [vmem:[%s1573 + $0x50] sm:$0xff]
      %v1585 = vld [vmem:[%s1573 + $0x58] sm:$0xff]
      %v1586 = vld [vmem:[%s1573 + $0x60] sm:$0xff]
      %v1587 = vld [vmem:[%s1573 + $0x68] sm:$0xff]
      %v1588 = vld [vmem:[%s1573 + $0x70] sm:$0xff]
      %v1589 = vld [vmem:[%s1573 + $0x78] sm:$0xff]
      %1590 = vmatprep.subr.mxu0 0.0
      %1591 = vmatpush1.msra.mxu0 %v1574
      %1592 = vmatprep.subr.mxu0 0.0
      %1593 = vmatpush1.msra.mxu0 %v1575
      %1594 = vmatprep.subr.mxu0 0.0
      %1595 = vmatpush1.msra.mxu0 %v1576
      %1596 = vmatprep.subr.mxu0 0.0
      %1597 = vmatpush1.msra.mxu0 %v1577
      %1598 = vmatprep.subr.mxu0 0.0
      %1599 = vmatpush1.msra.mxu0 %v1578
      %1600 = vmatprep.subr.mxu0 0.0
      %1601 = vmatpush1.msra.mxu0 %v1579
      %1602 = vmatprep.subr.mxu0 0.0
      %1603 = vmatpush1.msra.mxu0 %v1580
      %1604 = vmatprep.subr.mxu0 0.0
      %1605 = vmatpush1.msra.mxu0 %v1581
      %1606 = vmatprep.subr.mxu0 0.0
      %1607 = vmatpush1.msra.mxu0 %v1582
      %1608 = vmatprep.subr.mxu0 0.0
      %1609 = vmatpush1.msra.mxu0 %v1583
      %1610 = vmatprep.subr.mxu0 0.0
      %1611 = vmatpush1.msra.mxu0 %v1584
      %1612 = vmatprep.subr.mxu0 0.0
      %1613 = vmatpush1.msra.mxu0 %v1585
      %1614 = vmatprep.subr.mxu0 0.0
      %1615 = vmatpush1.msra.mxu0 %v1586
      %1616 = vmatprep.subr.mxu0 0.0
      %1617 = vmatpush1.msra.mxu0 %v1587
      %1618 = vmatprep.subr.mxu0 0.0
      %1619 = vmatpush1.msra.mxu0 %v1588
      %1620 = vmatprep.subr.mxu0 0.0
      %1621 = vmatpush1.msra.mxu0 %v1589
      %1622 = vmatprep.subr.mxu0 0.0
      %1623 = vmatpush1.msra.mxu0 0.0
      %1624 = vmatprep.subr.mxu0 0.0
      %1625 = vmatpush1.msra.mxu0 0.0
      %1626 = vmatprep.subr.mxu0 0.0
      %1627 = vmatpush1.msra.mxu0 0.0
      %1628 = vmatprep.subr.mxu0 0.0
      %1629 = vmatpush1.msra.mxu0 0.0
      %1630 = vmatprep.subr.mxu0 0.0
      %1631 = vmatpush1.msra.mxu0 0.0
      %1632 = vmatprep.subr.mxu0 0.0
      %1633 = vmatpush1.msra.mxu0 0.0
      %1634 = vmatprep.subr.mxu0 0.0
      %1635 = vmatpush1.msra.mxu0 0.0
      %1636 = vmatprep.subr.mxu0 0.0
      %1637 = vmatpush1.msra.mxu0 0.0
      %1638 = vmatprep.subr.mxu0 0.0
      %1639 = vmatpush1.msra.mxu0 0.0
      %1640 = vmatprep.subr.mxu0 0.0
      %1641 = vmatpush1.msra.mxu0 0.0
      %1642 = vmatprep.subr.mxu0 0.0
      %1643 = vmatpush1.msra.mxu0 0.0
      %1644 = vmatprep.subr.mxu0 0.0
      %1645 = vmatpush1.msra.mxu0 0.0
      %1646 = vmatprep.subr.mxu0 0.0
      %1647 = vmatpush1.msra.mxu0 0.0
      %1648 = vmatprep.subr.mxu0 0.0
      %1649 = vmatpush1.msra.mxu0 0.0
      %1650 = vmatprep.subr.mxu0 0.0
      %1651 = vmatpush1.msra.mxu0 0.0
      %1652 = vmatprep.subr.mxu0 0.0
      %1653 = vmatpush1.msra.mxu0 0.0
      %1654 = vmatprep.mubr.f32.mxu0 0.0
      %1655 = vmatmul.mubr.f32.gmra.mrb[0].mxu0 %v1558
      %v1656 = vpop.f32.mrb[0].mxu0
      %v1657 = vadd.f32 0.0, %v1656
      %v1658 = vpop.f32.mrb[0].mxu0
      %1659 = vmatprep.mubr.f32.mxu0 0.0
      %1660 = vmatmul.mubr.f32.gmra.mrb[0].mxu0 %v1560
      %v1661 = vpop.f32.mrb[0].mxu0
      %v1662 = vadd.f32 0.0, %v1661
      %v1663 = vpop.f32.mrb[0].mxu0
      %1664 = vmatprep.mubr.f32.mxu0 0.0
      %1665 = vmatmul.mubr.f32.gmra.mrb[0].mxu0 %v1562
      %v1666 = vpop.f32.mrb[0].mxu0
      %v1667 = vadd.f32 0.0, %v1666
      %v1668 = vpop.f32.mrb[0].mxu0
      %1669 = vmatprep.mubr.f32.mxu0 0.0
      %1670 = vmatmul.mubr.f32.gmra.mrb[0].mxu0 %v1564
      %v1671 = vpop.f32.mrb[0].mxu0
      %v1672 = vadd.f32 0.0, %v1671
      %v1673 = vpop.f32.mrb[0].mxu0
      %1674 = vmatprep.mubr.f32.mxu0 0.0
      %1675 = vmatmul.mubr.f32.gmra.mrb[0].mxu0 %v1566
      %v1676 = vpop.f32.mrb[0].mxu0
      %v1677 = vadd.f32 0.0, %v1676
      %v1678 = vpop.f32.mrb[0].mxu0
      %1679 = vmatprep.mubr.f32.mxu0 0.0
      %1680 = vmatmul.mubr.f32.gmra.mrb[0].mxu0 %v1568
      %v1681 = vpop.f32.mrb[0].mxu0
      %v1682 = vadd.f32 0.0, %v1681
      %v1683 = vpop.f32.mrb[0].mxu0
      %1684 = vmatprep.mubr.f32.mxu0 0.0
      %1685 = vmatmul.mubr.f32.gmra.mrb[0].mxu0 %v1570
      %v1686 = vpop.f32.mrb[0].mxu0
      %v1687 = vadd.f32 0.0, %v1686
      %v1688 = vpop.f32.mrb[0].mxu0
      %1689 = vmatprep.mubr.f32.mxu0 0.0
      %1690 = vmatmul.mubr.f32.gmra.mrb[0].mxu0 %v1572
      %v1691 = vpop.f32.mrb[0].mxu0
      %v1692 = vadd.f32 0.0, %v1691
      %v1693 = vpop.f32.mrb[0].mxu0
      %1694 = vdwg.mxu0
      %v1695 = vld [vmem:[#allocation2] sm:$0xff]
      %v1696 = vld [vmem:[#allocation2 + $0x8] sm:$0xff]
      %v1697 = vld [vmem:[#allocation2 + $0x10] sm:$0xff]
      %v1698 = vld [vmem:[#allocation2 + $0x18] sm:$0xff]
      %v1699 = vld [vmem:[#allocation2 + $0x20] sm:$0xff]
      %v1700 = vld [vmem:[#allocation2 + $0x28] sm:$0xff]
      %v1701 = vld [vmem:[#allocation2 + $0x30] sm:$0xff]
      %v1702 = vld [vmem:[#allocation2 + $0x38] sm:$0xff]
      %v1703 = vadd.f32 %v1695, %v1657
      %v1704 = vadd.f32 %v1696, %v1662
      %v1705 = vadd.f32 %v1697, %v1667
      %v1706 = vadd.f32 %v1698, %v1672
      %v1707 = vadd.f32 %v1699, %v1677
      %v1708 = vadd.f32 %v1700, %v1682
      %v1709 = vadd.f32 %v1701, %v1687
      %v1710 = vadd.f32 %v1702, %v1692
      %1711 = vst [vmem:[#allocation2] sm:$0xff] %v1703
      %1712 = vst [vmem:[#allocation2 + $0x8] sm:$0xff] %v1704
      %1713 = vst [vmem:[#allocation2 + $0x10] sm:$0xff] %v1705
      %1714 = vst [vmem:[#allocation2 + $0x18] sm:$0xff] %v1706
      %1715 = vst [vmem:[#allocation2 + $0x20] sm:$0xff] %v1707
      %1716 = vst [vmem:[#allocation2 + $0x28] sm:$0xff] %v1708
      %1717 = vst [vmem:[#allocation2 + $0x30] sm:$0xff] %v1709
      %1718 = vst [vmem:[#allocation2 + $0x38] sm:$0xff] %v1710
      %v1719 = vld [vmem:[#allocation2] sm:$0xff]
      %v1720 = vld [vmem:[#allocation2 + $0x8] sm:$0xff]
      %v1721 = vld [vmem:[#allocation2 + $0x10] sm:$0xff]
      %v1722 = vld [vmem:[#allocation2 + $0x18] sm:$0xff]
      %v1723 = vld [vmem:[#allocation2 + $0x20] sm:$0xff]
      %v1724 = vld [vmem:[#allocation2 + $0x28] sm:$0xff]
      %v1725 = vld [vmem:[#allocation2 + $0x30] sm:$0xff]
      %v1726 = vld [vmem:[#allocation2 + $0x38] sm:$0xff]
      %v1727 = vld [vmem:[%s4] sm:$0x1]
      %v1729 = vlaneseq
      %v1730 = vshrl.u32 %v1729, 7
      %v1731 = vsub.s32 0, %v1730
      %v1732 = vrot.slane %v1727, %v1731
      %v1734 = vadd.f32 %v1719, %v1732
      %v1735 = vadd.f32 %v1720, %v1732
      %v1736 = vadd.f32 %v1721, %v1732
      %v1737 = vadd.f32 %v1722, %v1732
      %v1738 = vadd.f32 %v1723, %v1732
      %v1739 = vadd.f32 %v1724, %v1732
      %v1740 = vadd.f32 %v1725, %v1732
      %v1741 = vadd.f32 %v1726, %v1732
      %1742 = vst [vmem:[%s279] sm:$0xff] %v1734
      %1743 = vst [vmem:[%s279 + $0x8] sm:$0xff] %v1735
      %1744 = vst [vmem:[%s279 + $0x10] sm:$0xff] %v1736
      %1745 = vst [vmem:[%s279 + $0x18] sm:$0xff] %v1737
      %1746 = vst [vmem:[%s279 + $0x20] sm:$0xff] %v1738
      %1747 = vst [vmem:[%s279 + $0x28] sm:$0xff] %v1739
      %1748 = vst [vmem:[%s279 + $0x30] sm:$0xff] %v1740
      %1749 = vst [vmem:[%s279 + $0x38] sm:$0xff] %v1741
      %s1750 = smul.u32 8, %s16
      %p1751 = scmp.lt.s32.totalorder %s1750, 15
      %s1752 = scalar_select %p1751, %s1750, 15
      %s1753 = smul.addr %s1752, 8
      %s1754 = scalar_lea.vmem %s5, %s1753
      // Predicated region
      $region41: #{_conv2d_nhwc_impl.1} parent=39 // pred_check
        %p1755 = pneg %p154
      $region42: #{_conv2d_nhwc_impl.1} parent=39 // pred_check_branch
        %1757 = sbr.rel (%p1755) target = $region44
      $region43: #{_conv2d_nhwc_impl.1} parent=39 // pred_region
        %s1758 = smul.u32 8, %s16
      $region44: #{_conv2d_nhwc_impl.1} parent=39 // pred_fallthru
        _
    $region40: #{_conv2d_nhwc_impl.1} parent=5 // pred_fallthru
      _
    %p1759 = scmp.le.s32.totalorder 2, %s11
    // Predicated region
    $region45: #{_conv2d_nhwc_impl.1} parent=5 // pred_check
      %p1760 = pneg %p1759
    $region46: #{_conv2d_nhwc_impl.1} parent=5 // pred_check_branch
      %1762 = sbr.rel (%p1760) target = $region48
    $region47: #{_conv2d_nhwc_impl.1} parent=5 // pred_region
      %s1763 = ssub.s32 %s11, 2
      // Predicated region
      $region49: #{_conv2d_nhwc_impl.1} parent=47 // pred_check
        %p1764 = pneg %p160
      $region50: #{_conv2d_nhwc_impl.1} parent=47 // pred_check_branch
        %1766 = sbr.rel (%p1764) target = $region52
      $region51: #{_conv2d_nhwc_impl.1} parent=47 // pred_region
        %s1767 = smul.u32 8, %s17
        %p1768 = scmp.lt.s32.totalorder %s1767, 15
        %s1769 = scalar_select %p1768, %s1767, 15
        %s1770 = smul.addr %s1769, 8
        %s1771 = scalar_lea.vmem %s5, %s1770
      $region52: #{_conv2d_nhwc_impl.1} parent=47 // pred_fallthru
        _
    $region48: #{_conv2d_nhwc_impl.1} parent=5 // pred_fallthru
      _
  $region6: #{_conv2d_nhwc_impl.1} parent=0 // loop_footer
    %s15 = sadd.s32 1, %s11
  $region7: #{_conv2d_nhwc_impl.1} parent=0 // loop_footer_branch
    %10 = sbr.rel target = $region3
  $region8: #{_conv2d_nhwc_impl.1} parent=0 // loop_exit
    _

</llo_original>
